<compile_context>
chip_gen: v7x
topology: tpu7x:2x2x1
jax: 0.10.0
libtpu: 0.0.40
codegen_flags: <defaults>
</compile_context>

<pallas_src>
import functools

import jax
import jax.numpy as jnp
from jax.experimental import pallas as pl
from jax.experimental.pallas import tpu as pltpu


# ------------------------------- kernel --------------------------------------

def _attention_kernel(x_ref, wqkv_ref, bqkv_ref, wproj_ref, bproj_ref,   # in
                      o_ref,                                             # out
                      qkv_s, q_s, k_s, v_s, oc_s,                        # scratch
                      *, num_heads):
    """Grid step (b, qi): one query tile of one batch element.

    x_ref     (N, C)      full sequence of batch b (only read at qi == 0)
    wqkv_ref  (C, 3C)     fused QKV weight, softmax scale folded into W_q
    bqkv_ref  (1, 3C)     fused QKV bias (zeros when qkv_bias=False), scaled
    wproj_ref (C, C)      output projection weight
    bproj_ref (1, C)      output projection bias
    o_ref     (TQ, C)     output tile
    qkv_s     (N, 3C)     fused QKV activations           (filled at qi == 0)
    q_s       (QT,H,TQ,D) head-major / tile-major queries (filled at qi == 0)
    k_s, v_s  (H, N, D)   head-major keys / values        (filled at qi == 0)
    oc_s      (TQ, C)     head-concatenated attention output (proj input)
    """
    f32 = jnp.float32
    n, c = x_ref.shape
    d = c // num_heads
    n_qt, _, tq, _ = q_s.shape
    dt = x_ref.dtype

    qi = pl.program_id(1)

    # ---- once per batch element: fused QKV projection + head split ---------
    @pl.when(qi == 0)
    def _():
        x = x_ref[...]                                                # (N, C)
        qkv = jnp.dot(x, wqkv_ref[...], preferred_element_type=f32)  # (N, 3C)
        qkv_s[...] = (qkv + bqkv_ref[...].astype(f32)).astype(dt)
        # One-time split into head-major scratches (static slices only), so
        # the per-tile hot path never slices sub-128-lane head chunks.
        for h in range(num_heads):
            k_s[h] = qkv_s[:, 1 * c + h * d:1 * c + (h + 1) * d]      # (N, D)
            v_s[h] = qkv_s[:, 2 * c + h * d:2 * c + (h + 1) * d]      # (N, D)
            for t in range(n_qt):
                q_s[t, h] = qkv_s[t * tq:(t + 1) * tq,
                                  0 * c + h * d:0 * c + (h + 1) * d]  # (TQ, D)

    # ---- every query tile: batched-over-heads attention --------------------
    q = q_s[qi]                                        # (H, TQ, D), scale folded
    k = k_s[...]                                       # (H, N, D)
    v = v_s[...]                                       # (H, N, D)

    s = jnp.einsum("hqd,hkd->hqk", q, k,
                   preferred_element_type=f32)         # (H, TQ, N)

    # Numerically stable softmax in f32; EUP approximate reciprocal.
    m = jnp.max(s, axis=-1, keepdims=True)
    p = jnp.exp(s - m)
    p = p * pl.reciprocal(jnp.sum(p, axis=-1, keepdims=True), approx=True)

    o = jnp.einsum("hqk,hkd->hqd", p.astype(dt), v,
                   preferred_element_type=f32)         # (H, TQ, D)

    # Concatenate heads into a lane-dense (TQ, C) slab and run ONE K=C
    # projection matmul (instead of H K=D matmuls + f32 accumulator RMW).
    for h in range(num_heads):
        oc_s[:, h * d:(h + 1) * d] = o[h].astype(dt)

    out = jnp.dot(oc_s[...], wproj_ref[...], preferred_element_type=f32)
    o_ref[...] = (out + bproj_ref[...].astype(f32)).astype(o_ref.dtype)


# ------------------------------- wrapper --------------------------------------

def _pick_query_tile(n):
    """Largest 8-multiple tile dividing N that yields >= 2 pipeline steps."""
    for cand in (256, 128, 64, 32, 16, 8):
        if n % cand == 0 and n // cand >= 2:
            return cand
    return n


def _vmem_limit_bytes(n, c, tq, num_heads, itemsize):
    d = c // num_heads
    weights = c * 3 * c + 3 * c + c * c + c
    est = (2 * n * c                       # x block (double-buffered)
           + 2 * weights                   # weight / bias blocks (double-buffered)
           + 2 * tq * c                    # output block (double-buffered)
           + n * 3 * c                     # fused-QKV scratch
           + 3 * num_heads * n * d         # head-major q/k/v scratches
           + tq * c) * itemsize            # head-concat scratch
    est += num_heads * tq * n * 4 * 2      # f32 score/prob spill headroom
    # Above the v5e 16 MiB scoped default, clamped to v7x's 64 MiB physical.
    return int(min(max(2 * est, 32 * 1024 * 1024), 64 * 1024 * 1024))


def attention_forward(x, params, num_heads, *, query_tile=None):
    """Attention.forward: x (B, N, C) -> (B, N, C)."""
    B, N, C = x.shape
    assert C % num_heads == 0
    D = C // num_heads
    scale = D ** (-0.5)                    # qk_scale=None -> head_dim ** -0.5
    dt = x.dtype

    # Fused QKV weight stored (in, out) = (C, 3C); the 3C axis is ordered
    # (3, H, D) exactly like the PyTorch reshape.  Fold the softmax scale
    # into the q third of the weight (and bias): scale*(x@Wq + bq).
    w_qkv = params["w_qkv"].astype(dt).at[:, :C].multiply(scale)
    b_qkv = params.get("b_qkv", None)
    if b_qkv is None:                      # qkv_bias=False
        b_qkv = jnp.zeros((1, 3 * C), dt)
    else:
        b_qkv = b_qkv.astype(dt).at[:C].multiply(scale).reshape(1, 3 * C)

    w_proj = params["w_proj"].astype(dt)              # (C, C), stored (in, out)
    b_proj = params["b_proj"].astype(dt).reshape(1, C)

    TQ = query_tile or _pick_query_tile(N)
    assert N % TQ == 0, "query tile must divide N"
    n_qt = N // TQ

    kernel = functools.partial(_attention_kernel, num_heads=num_heads)

    return pl.pallas_call(
        kernel,
        out_shape=jax.ShapeDtypeStruct((B, N, C), dt),
        grid_spec=pltpu.PrefetchScalarGridSpec(
            num_scalar_prefetch=0,
            grid=(B, n_qt),                                   # (batch, q-tile)
            in_specs=[
                pl.BlockSpec((None, N, C), lambda b, q: (b, 0, 0)),   # x (full)
                pl.BlockSpec((C, 3 * C), lambda b, q: (0, 0)),        # w_qkv
                pl.BlockSpec((1, 3 * C), lambda b, q: (0, 0)),        # b_qkv
                pl.BlockSpec((C, C), lambda b, q: (0, 0)),            # w_proj
                pl.BlockSpec((1, C), lambda b, q: (0, 0)),            # b_proj
            ],
            out_specs=pl.BlockSpec((None, TQ, C), lambda b, q: (b, q, 0)),
            scratch_shapes=[
                pltpu.VMEM((N, 3 * C), dt),                    # fused qkv
                pltpu.VMEM((n_qt, num_heads, TQ, D), dt),      # q (tile-major)
                pltpu.VMEM((num_heads, N, D), dt),             # k (head-major)
                pltpu.VMEM((num_heads, N, D), dt),             # v (head-major)
                pltpu.VMEM((TQ, C), dt),                       # head concat
            ],
        ),
        compiler_params=pltpu.CompilerParams(
            # Batch elements are independent -> megacore-parallel.  The query
            # tile axis reuses the per-batch K/V scratches -> sequential.
            dimension_semantics=("parallel", "arbitrary"),
            vmem_limit_bytes=_vmem_limit_bytes(N, C, TQ, num_heads,
                                               jnp.dtype(dt).itemsize),
        ),
    )(x, w_qkv, b_qkv, w_proj, b_proj)


# --------------------------- reference (pure JAX) -----------------------------

def attention_reference(x, params, num_heads):
    B, N, C = x.shape
    D = C // num_heads
    scale = D ** (-0.5)
    hi = jax.lax.Precision.HIGHEST
    qkv = jnp.einsum("bnc,cd->bnd", x, params["w_qkv"], precision=hi)
    if params.get("b_qkv", None) is not None:
        qkv = qkv + params["b_qkv"]
    qkv = qkv.reshape(B, N, 3, num_heads, D).transpose(2, 0, 3, 1, 4)
    q, k, v = qkv[0], qkv[1], qkv[2]
    s = jnp.einsum("bhnd,bhmd->bhnm", q, k, precision=hi) * scale
    p = jax.nn.softmax(s, axis=-1)
    o = jnp.einsum("bhnm,bhmd->bhnd", p, v, precision=hi)
    o = o.transpose(0, 2, 1, 3).reshape(B, N, C)
    return jnp.dot(o, params["w_proj"], precision=hi) + params["b_proj"]


# ---------------------------------- main --------------------------------------

if __name__ == "__main__":
    B, N, C = 2, 16, 128        # small but lane-dense (C multiple of 128)
    num_heads = 8               # head_dim = 16

    key = jax.random.PRNGKey(0)
    kx, kw1, kb1, kw2, kb2 = jax.random.split(key, 5)

    x = jax.random.normal(kx, (B, N, C), dtype=jnp.float32)
    params = {
        # nn.Linear(dim, 3*dim) weight, stored transposed (in, out)
        "w_qkv": jax.random.normal(kw1, (C, 3 * C), dtype=jnp.float32) * 0.05,
        # optional qkv bias (qkv_bias=True path); omit this key for bias=False
        "b_qkv": jax.random.normal(kb1, (3 * C,), dtype=jnp.float32) * 0.1,
        # nn.Linear(dim, dim) weight (transposed) and bias
        "w_proj": jax.random.normal(kw2, (C, C), dtype=jnp.float32) * 0.05,
        "b_proj": jax.random.normal(kb2, (C,), dtype=jnp.float32) * 0.1,
    }

    out = attention_forward(x, params, num_heads)   # TQ=8 -> grid (2, 2)
    out = jax.block_until_ready(out)

    ref = attention_reference(x, params, num_heads)
    assert out.shape == ref.shape == (B, N, C)
    err = float(jnp.max(jnp.abs(out - ref)))
    # Tolerance covers the EUP approximate reciprocal and MXU f32 rounding.
    assert err < 2e-2, f"mismatch vs reference: max abs err = {err}"

    print("KERNEL_OK")
</pallas_src>

<mosaic_0001>
module attributes {stable_mosaic.version = 11 : i64} {
  func.func @_attention_kernel(%arg0: i32, %arg1: i32, %arg2: memref<1x16x128xf32, #tpu.memory_space<vmem>>, %arg3: memref<128x384xf32, #tpu.memory_space<vmem>>, %arg4: memref<1x384xf32, #tpu.memory_space<vmem>>, %arg5: memref<128x128xf32, #tpu.memory_space<vmem>>, %arg6: memref<1x128xf32, #tpu.memory_space<vmem>>, %arg7: memref<1x8x128xf32, #tpu.memory_space<vmem>>, %arg8: memref<16x384xf32, #tpu.memory_space<vmem>>, %arg9: memref<2x8x8x16xf32, #tpu.memory_space<vmem>>, %arg10: memref<8x16x16xf32, #tpu.memory_space<vmem>>, %arg11: memref<8x16x16xf32, #tpu.memory_space<vmem>>, %arg12: memref<8x128xf32, #tpu.memory_space<vmem>>) attributes {dimension_semantics = [#tpu.dimension_semantics<parallel>, #tpu.dimension_semantics<arbitrary>], iteration_bounds = array<i64: 2, 2>, scalar_prefetch = 0 : i64, scratch_operands = 5 : i64, tpu.core_type = #tpu.core_type<tc>, window_params = [{transform_indices = @transform_0, window_bounds = array<i64: 1, 16, 128>}, {pipeline_mode = #tpu.pipeline_mode<synchronous>, transform_indices = @transform_1, window_bounds = array<i64: 128, 384>}, {pipeline_mode = #tpu.pipeline_mode<synchronous>, transform_indices = @transform_2, window_bounds = array<i64: 1, 384>}, {pipeline_mode = #tpu.pipeline_mode<synchronous>, transform_indices = @transform_3, window_bounds = array<i64: 128, 128>}, {pipeline_mode = #tpu.pipeline_mode<synchronous>, transform_indices = @transform_4, window_bounds = array<i64: 1, 128>}, {transform_indices = @transform_5, window_bounds = array<i64: 1, 8, 128>}]} {
    %c0_i32 = arith.constant 0 : i32
    %0 = arith.cmpi eq, %arg1, %c0_i32 : i32
    %1 = arith.extui %0 : i1 to i32
    %c0_i32_0 = arith.constant 0 : i32
    %2 = arith.cmpi ne, %1, %c0_i32_0 : i32
    scf.if %2 {
      %c0_31 = arith.constant 0 : index
      %c0_32 = arith.constant 0 : index
      %c0_33 = arith.constant 0 : index
      %53 = vector.load %arg2[%c0_31, %c0_32, %c0_33] : memref<1x16x128xf32, #tpu.memory_space<vmem>>, vector<1x16x128xf32>
      %54 = vector.shape_cast %53 : vector<1x16x128xf32> to vector<16x128xf32>
      %c0_34 = arith.constant 0 : index
      %c0_35 = arith.constant 0 : index
      %55 = vector.load %arg3[%c0_34, %c0_35] : memref<128x384xf32, #tpu.memory_space<vmem>>, vector<128x384xf32>
      %cst_36 = arith.constant dense<0.000000e+00> : vector<16x384xf32>
      %56 = tpu.matmul %54, %55, %cst_36 {dimension_numbers = #tpu.dot_dimension_numbers<[1], [0], [0], [1], [0, 0, 1, 1], [], []>} : vector<16x128xf32>, vector<128x384xf32>, vector<16x384xf32> -> vector<16x384xf32>
      %c0_37 = arith.constant 0 : index
      %c0_38 = arith.constant 0 : index
      %57 = vector.load %arg4[%c0_37, %c0_38] : memref<1x384xf32, #tpu.memory_space<vmem>>, vector<1x384xf32>
      %58 = vector.broadcast %57 : vector<1x384xf32> to vector<16x384xf32>
      %59 = arith.addf %56, %58 : vector<16x384xf32>
      %c0_39 = arith.constant 0 : index
      %c0_40 = arith.constant 0 : index
      %60 = vector.load %arg8[%c0_39, %c0_40] : memref<16x384xf32, #tpu.memory_space<vmem>>, vector<16x384xf32>
      tpu.vector_store %arg8[%c0_39, %c0_40], %59 {strides = array<i32>} : memref<16x384xf32, #tpu.memory_space<vmem>>, vector<16x384xf32>,
      %c0_41 = arith.constant 0 : index
      %c128 = arith.constant 128 : index
      %61 = vector.load %arg8[%c0_41, %c128] : memref<16x384xf32, #tpu.memory_space<vmem>>, vector<16x16xf32>
      %c0_42 = arith.constant 0 : index
      %c0_43 = arith.constant 0 : index
      %c0_44 = arith.constant 0 : index
      %62 = vector.load %arg10[%c0_42, %c0_43, %c0_44] : memref<8x16x16xf32, #tpu.memory_space<vmem>>, vector<1x16x16xf32>
      %63 = vector.shape_cast %62 : vector<1x16x16xf32> to vector<16x16xf32>
      %64 = vector.shape_cast %61 : vector<16x16xf32> to vector<1x16x16xf32>
      tpu.vector_store %arg10[%c0_42, %c0_43, %c0_44], %64 {strides = array<i32>} : memref<8x16x16xf32, #tpu.memory_space<vmem>>, vector<1x16x16xf32>,
      %c0_45 = arith.constant 0 : index
      %c256 = arith.constant 256 : index
      %65 = vector.load %arg8[%c0_45, %c256] : memref<16x384xf32, #tpu.memory_space<vmem>>, vector<16x16xf32>
      %c0_46 = arith.constant 0 : index
      %c0_47 = arith.constant 0 : index
      %c0_48 = arith.constant 0 : index
      %66 = vector.load %arg11[%c0_46, %c0_47, %c0_48] : memref<8x16x16xf32, #tpu.memory_space<vmem>>, vector<1x16x16xf32>
      %67 = vector.shape_cast %66 : vector<1x16x16xf32> to vector<16x16xf32>
      %68 = vector.shape_cast %65 : vector<16x16xf32> to vector<1x16x16xf32>
      tpu.vector_store %arg11[%c0_46, %c0_47, %c0_48], %68 {strides = array<i32>} : memref<8x16x16xf32, #tpu.memory_space<vmem>>, vector<1x16x16xf32>,
      %c0_49 = arith.constant 0 : index
      %c0_50 = arith.constant 0 : index
      %69 = vector.load %arg8[%c0_49, %c0_50] : memref<16x384xf32, #tpu.memory_space<vmem>>, vector<8x16xf32>
      %c0_51 = arith.constant 0 : index
      %c0_52 = arith.constant 0 : index
      %c0_53 = arith.constant 0 : index
      %c0_54 = arith.constant 0 : index
      %70 = vector.load %arg9[%c0_51, %c0_52, %c0_53, %c0_54] : memref<2x8x8x16xf32, #tpu.memory_space<vmem>>, vector<1x1x8x16xf32>
      %71 = vector.shape_cast %70 : vector<1x1x8x16xf32> to vector<8x16xf32>
      %72 = vector.shape_cast %69 : vector<8x16xf32> to vector<1x1x8x16xf32>
      tpu.vector_store %arg9[%c0_51, %c0_52, %c0_53, %c0_54], %72 {strides = array<i32>} : memref<2x8x8x16xf32, #tpu.memory_space<vmem>>, vector<1x1x8x16xf32>,
      %c8 = arith.constant 8 : index
      %c0_55 = arith.constant 0 : index
      %73 = vector.load %arg8[%c8, %c0_55] : memref<16x384xf32, #tpu.memory_space<vmem>>, vector<8x16xf32>
      %c1 = arith.constant 1 : index
      %c0_56 = arith.constant 0 : index
      %c0_57 = arith.constant 0 : index
      %c0_58 = arith.constant 0 : index
      %74 = vector.load %arg9[%c1, %c0_56, %c0_57, %c0_58] : memref<2x8x8x16xf32, #tpu.memory_space<vmem>>, vector<1x1x8x16xf32>
      %75 = vector.shape_cast %74 : vector<1x1x8x16xf32> to vector<8x16xf32>
      %76 = vector.shape_cast %73 : vector<8x16xf32> to vector<1x1x8x16xf32>
      tpu.vector_store %arg9[%c1, %c0_56, %c0_57, %c0_58], %76 {strides = array<i32>} : memref<2x8x8x16xf32, #tpu.memory_space<vmem>>, vector<1x1x8x16xf32>,
      %c0_59 = arith.constant 0 : index
      %c144 = arith.constant 144 : index
      %77 = vector.load %arg8[%c0_59, %c144] : memref<16x384xf32, #tpu.memory_space<vmem>>, vector<16x16xf32>
      %c1_60 = arith.constant 1 : index
      %c0_61 = arith.constant 0 : index
      %c0_62 = arith.constant 0 : index
      %78 = vector.load %arg10[%c1_60, %c0_61, %c0_62] : memref<8x16x16xf32, #tpu.memory_space<vmem>>, vector<1x16x16xf32>
      %79 = vector.shape_cast %78 : vector<1x16x16xf32> to vector<16x16xf32>
      %80 = vector.shape_cast %77 : vector<16x16xf32> to vector<1x16x16xf32>
      tpu.vector_store %arg10[%c1_60, %c0_61, %c0_62], %80 {strides = array<i32>} : memref<8x16x16xf32, #tpu.memory_space<vmem>>, vector<1x16x16xf32>,
      %c0_63 = arith.constant 0 : index
      %c272 = arith.constant 272 : index
      %81 = vector.load %arg8[%c0_63, %c272] : memref<16x384xf32, #tpu.memory_space<vmem>>, vector<16x16xf32>
      %c1_64 = arith.constant 1 : index
      %c0_65 = arith.constant 0 : index
      %c0_66 = arith.constant 0 : index
      %82 = vector.load %arg11[%c1_64, %c0_65, %c0_66] : memref<8x16x16xf32, #tpu.memory_space<vmem>>, vector<1x16x16xf32>
      %83 = vector.shape_cast %82 : vector<1x16x16xf32> to vector<16x16xf32>
      %84 = vector.shape_cast %81 : vector<16x16xf32> to vector<1x16x16xf32>
      tpu.vector_store %arg11[%c1_64, %c0_65, %c0_66], %84 {strides = array<i32>} : memref<8x16x16xf32, #tpu.memory_space<vmem>>, vector<1x16x16xf32>,
      %c0_67 = arith.constant 0 : index
      %c16_68 = arith.constant 16 : index
      %85 = vector.load %arg8[%c0_67, %c16_68] : memref<16x384xf32, #tpu.memory_space<vmem>>, vector<8x16xf32>
      %c0_69 = arith.constant 0 : index
      %c1_70 = arith.constant 1 : index
      %c0_71 = arith.constant 0 : index
      %c0_72 = arith.constant 0 : index
      %86 = vector.load %arg9[%c0_69, %c1_70, %c0_71, %c0_72] : memref<2x8x8x16xf32, #tpu.memory_space<vmem>>, vector<1x1x8x16xf32>
      %87 = vector.shape_cast %86 : vector<1x1x8x16xf32> to vector<8x16xf32>
      %88 = vector.shape_cast %85 : vector<8x16xf32> to vector<1x1x8x16xf32>
      tpu.vector_store %arg9[%c0_69, %c1_70, %c0_71, %c0_72], %88 {strides = array<i32>} : memref<2x8x8x16xf32, #tpu.memory_space<vmem>>, vector<1x1x8x16xf32>,
      %c8_73 = arith.constant 8 : index
      %c16_74 = arith.constant 16 : index
      %89 = vector.load %arg8[%c8_73, %c16_74] : memref<16x384xf32, #tpu.memory_space<vmem>>, vector<8x16xf32>
      %c1_75 = arith.constant 1 : index
      %c1_76 = arith.constant 1 : index
      %c0_77 = arith.constant 0 : index
      %c0_78 = arith.constant 0 : index
      %90 = vector.load %arg9[%c1_75, %c1_76, %c0_77, %c0_78] : memref<2x8x8x16xf32, #tpu.memory_space<vmem>>, vector<1x1x8x16xf32>
      %91 = vector.shape_cast %90 : vector<1x1x8x16xf32> to vector<8x16xf32>
      %92 = vector.shape_cast %89 : vector<8x16xf32> to vector<1x1x8x16xf32>
      tpu.vector_store %arg9[%c1_75, %c1_76, %c0_77, %c0_78], %92 {strides = array<i32>} : memref<2x8x8x16xf32, #tpu.memory_space<vmem>>, vector<1x1x8x16xf32>,
      %c0_79 = arith.constant 0 : index
      %c160 = arith.constant 160 : index
      %93 = vector.load %arg8[%c0_79, %c160] : memref<16x384xf32, #tpu.memory_space<vmem>>, vector<16x16xf32>
      %c2 = arith.constant 2 : index
      %c0_80 = arith.constant 0 : index
      %c0_81 = arith.constant 0 : index
      %94 = vector.load %arg10[%c2, %c0_80, %c0_81] : memref<8x16x16xf32, #tpu.memory_space<vmem>>, vector<1x16x16xf32>
      %95 = vector.shape_cast %94 : vector<1x16x16xf32> to vector<16x16xf32>
      %96 = vector.shape_cast %93 : vector<16x16xf32> to vector<1x16x16xf32>
      tpu.vector_store %arg10[%c2, %c0_80, %c0_81], %96 {strides = array<i32>} : memref<8x16x16xf32, #tpu.memory_space<vmem>>, vector<1x16x16xf32>,
      %c0_82 = arith.constant 0 : index
      %c288 = arith.constant 288 : index
      %97 = vector.load %arg8[%c0_82, %c288] : memref<16x384xf32, #tpu.memory_space<vmem>>, vector<16x16xf32>
      %c2_83 = arith.constant 2 : index
      %c0_84 = arith.constant 0 : index
      %c0_85 = arith.constant 0 : index
      %98 = vector.load %arg11[%c2_83, %c0_84, %c0_85] : memref<8x16x16xf32, #tpu.memory_space<vmem>>, vector<1x16x16xf32>
      %99 = vector.shape_cast %98 : vector<1x16x16xf32> to vector<16x16xf32>
      %100 = vector.shape_cast %97 : vector<16x16xf32> to vector<1x16x16xf32>
      tpu.vector_store %arg11[%c2_83, %c0_84, %c0_85], %100 {strides = array<i32>} : memref<8x16x16xf32, #tpu.memory_space<vmem>>, vector<1x16x16xf32>,
      %c0_86 = arith.constant 0 : index
      %c32_87 = arith.constant 32 : index
      %101 = vector.load %arg8[%c0_86, %c32_87] : memref<16x384xf32, #tpu.memory_space<vmem>>, vector<8x16xf32>
      %c0_88 = arith.constant 0 : index
      %c2_89 = arith.constant 2 : index
      %c0_90 = arith.constant 0 : index
      %c0_91 = arith.constant 0 : index
      %102 = vector.load %arg9[%c0_88, %c2_89, %c0_90, %c0_91] : memref<2x8x8x16xf32, #tpu.memory_space<vmem>>, vector<1x1x8x16xf32>
      %103 = vector.shape_cast %102 : vector<1x1x8x16xf32> to vector<8x16xf32>
      %104 = vector.shape_cast %101 : vector<8x16xf32> to vector<1x1x8x16xf32>
      tpu.vector_store %arg9[%c0_88, %c2_89, %c0_90, %c0_91], %104 {strides = array<i32>} : memref<2x8x8x16xf32, #tpu.memory_space<vmem>>, vector<1x1x8x16xf32>,
      %c8_92 = arith.constant 8 : index
      %c32_93 = arith.constant 32 : index
      %105 = vector.load %arg8[%c8_92, %c32_93] : memref<16x384xf32, #tpu.memory_space<vmem>>, vector<8x16xf32>
      %c1_94 = arith.constant 1 : index
      %c2_95 = arith.constant 2 : index
      %c0_96 = arith.constant 0 : index
      %c0_97 = arith.constant 0 : index
      %106 = vector.load %arg9[%c1_94, %c2_95, %c0_96, %c0_97] : memref<2x8x8x16xf32, #tpu.memory_space<vmem>>, vector<1x1x8x16xf32>
      %107 = vector.shape_cast %106 : vector<1x1x8x16xf32> to vector<8x16xf32>
      %108 = vector.shape_cast %105 : vector<8x16xf32> to vector<1x1x8x16xf32>
      tpu.vector_store %arg9[%c1_94, %c2_95, %c0_96, %c0_97], %108 {strides = array<i32>} : memref<2x8x8x16xf32, #tpu.memory_space<vmem>>, vector<1x1x8x16xf32>,
      %c0_98 = arith.constant 0 : index
      %c176 = arith.constant 176 : index
      %109 = vector.load %arg8[%c0_98, %c176] : memref<16x384xf32, #tpu.memory_space<vmem>>, vector<16x16xf32>
      %c3 = arith.constant 3 : index
      %c0_99 = arith.constant 0 : index
      %c0_100 = arith.constant 0 : index
      %110 = vector.load %arg10[%c3, %c0_99, %c0_100] : memref<8x16x16xf32, #tpu.memory_space<vmem>>, vector<1x16x16xf32>
      %111 = vector.shape_cast %110 : vector<1x16x16xf32> to vector<16x16xf32>
      %112 = vector.shape_cast %109 : vector<16x16xf32> to vector<1x16x16xf32>
      tpu.vector_store %arg10[%c3, %c0_99, %c0_100], %112 {strides = array<i32>} : memref<8x16x16xf32, #tpu.memory_space<vmem>>, vector<1x16x16xf32>,
      %c0_101 = arith.constant 0 : index
      %c304 = arith.constant 304 : index
      %113 = vector.load %arg8[%c0_101, %c304] : memref<16x384xf32, #tpu.memory_space<vmem>>, vector<16x16xf32>
      %c3_102 = arith.constant 3 : index
      %c0_103 = arith.constant 0 : index
      %c0_104 = arith.constant 0 : index
      %114 = vector.load %arg11[%c3_102, %c0_103, %c0_104] : memref<8x16x16xf32, #tpu.memory_space<vmem>>, vector<1x16x16xf32>
      %115 = vector.shape_cast %114 : vector<1x16x16xf32> to vector<16x16xf32>
      %116 = vector.shape_cast %113 : vector<16x16xf32> to vector<1x16x16xf32>
      tpu.vector_store %arg11[%c3_102, %c0_103, %c0_104], %116 {strides = array<i32>} : memref<8x16x16xf32, #tpu.memory_space<vmem>>, vector<1x16x16xf32>,
      %c0_105 = arith.constant 0 : index
      %c48_106 = arith.constant 48 : index
      %117 = vector.load %arg8[%c0_105, %c48_106] : memref<16x384xf32, #tpu.memory_space<vmem>>, vector<8x16xf32>
      %c0_107 = arith.constant 0 : index
      %c3_108 = arith.constant 3 : index
      %c0_109 = arith.constant 0 : index
      %c0_110 = arith.constant 0 : index
      %118 = vector.load %arg9[%c0_107, %c3_108, %c0_109, %c0_110] : memref<2x8x8x16xf32, #tpu.memory_space<vmem>>, vector<1x1x8x16xf32>
      %119 = vector.shape_cast %118 : vector<1x1x8x16xf32> to vector<8x16xf32>
      %120 = vector.shape_cast %117 : vector<8x16xf32> to vector<1x1x8x16xf32>
      tpu.vector_store %arg9[%c0_107, %c3_108, %c0_109, %c0_110], %120 {strides = array<i32>} : memref<2x8x8x16xf32, #tpu.memory_space<vmem>>, vector<1x1x8x16xf32>,
      %c8_111 = arith.constant 8 : index
      %c48_112 = arith.constant 48 : index
      %121 = vector.load %arg8[%c8_111, %c48_112] : memref<16x384xf32, #tpu.memory_space<vmem>>, vector<8x16xf32>
      %c1_113 = arith.constant 1 : index
      %c3_114 = arith.constant 3 : index
      %c0_115 = arith.constant 0 : index
      %c0_116 = arith.constant 0 : index
      %122 = vector.load %arg9[%c1_113, %c3_114, %c0_115, %c0_116] : memref<2x8x8x16xf32, #tpu.memory_space<vmem>>, vector<1x1x8x16xf32>
      %123 = vector.shape_cast %122 : vector<1x1x8x16xf32> to vector<8x16xf32>
      %124 = vector.shape_cast %121 : vector<8x16xf32> to vector<1x1x8x16xf32>
      tpu.vector_store %arg9[%c1_113, %c3_114, %c0_115, %c0_116], %124 {strides = array<i32>} : memref<2x8x8x16xf32, #tpu.memory_space<vmem>>, vector<1x1x8x16xf32>,
      %c0_117 = arith.constant 0 : index
      %c192 = arith.constant 192 : index
      %125 = vector.load %arg8[%c0_117, %c192] : memref<16x384xf32, #tpu.memory_space<vmem>>, vector<16x16xf32>
      %c4 = arith.constant 4 : index
      %c0_118 = arith.constant 0 : index
      %c0_119 = arith.constant 0 : index
      %126 = vector.load %arg10[%c4, %c0_118, %c0_119] : memref<8x16x16xf32, #tpu.memory_space<vmem>>, vector<1x16x16xf32>
      %127 = vector.shape_cast %126 : vector<1x16x16xf32> to vector<16x16xf32>
      %128 = vector.shape_cast %125 : vector<16x16xf32> to vector<1x16x16xf32>
      tpu.vector_store %arg10[%c4, %c0_118, %c0_119], %128 {strides = array<i32>} : memref<8x16x16xf32, #tpu.memory_space<vmem>>, vector<1x16x16xf32>,
      %c0_120 = arith.constant 0 : index
      %c320 = arith.constant 320 : index
      %129 = vector.load %arg8[%c0_120, %c320] : memref<16x384xf32, #tpu.memory_space<vmem>>, vector<16x16xf32>
      %c4_121 = arith.constant 4 : index
      %c0_122 = arith.constant 0 : index
      %c0_123 = arith.constant 0 : index
      %130 = vector.load %arg11[%c4_121, %c0_122, %c0_123] : memref<8x16x16xf32, #tpu.memory_space<vmem>>, vector<1x16x16xf32>
      %131 = vector.shape_cast %130 : vector<1x16x16xf32> to vector<16x16xf32>
      %132 = vector.shape_cast %129 : vector<16x16xf32> to vector<1x16x16xf32>
      tpu.vector_store %arg11[%c4_121, %c0_122, %c0_123], %132 {strides = array<i32>} : memref<8x16x16xf32, #tpu.memory_space<vmem>>, vector<1x16x16xf32>,
      %c0_124 = arith.constant 0 : index
      %c64_125 = arith.constant 64 : index
      %133 = vector.load %arg8[%c0_124, %c64_125] : memref<16x384xf32, #tpu.memory_space<vmem>>, vector<8x16xf32>
      %c0_126 = arith.constant 0 : index
      %c4_127 = arith.constant 4 : index
      %c0_128 = arith.constant 0 : index
      %c0_129 = arith.constant 0 : index
      %134 = vector.load %arg9[%c0_126, %c4_127, %c0_128, %c0_129] : memref<2x8x8x16xf32, #tpu.memory_space<vmem>>, vector<1x1x8x16xf32>
      %135 = vector.shape_cast %134 : vector<1x1x8x16xf32> to vector<8x16xf32>
      %136 = vector.shape_cast %133 : vector<8x16xf32> to vector<1x1x8x16xf32>
      tpu.vector_store %arg9[%c0_126, %c4_127, %c0_128, %c0_129], %136 {strides = array<i32>} : memref<2x8x8x16xf32, #tpu.memory_space<vmem>>, vector<1x1x8x16xf32>,
      %c8_130 = arith.constant 8 : index
      %c64_131 = arith.constant 64 : index
      %137 = vector.load %arg8[%c8_130, %c64_131] : memref<16x384xf32, #tpu.memory_space<vmem>>, vector<8x16xf32>
      %c1_132 = arith.constant 1 : index
      %c4_133 = arith.constant 4 : index
      %c0_134 = arith.constant 0 : index
      %c0_135 = arith.constant 0 : index
      %138 = vector.load %arg9[%c1_132, %c4_133, %c0_134, %c0_135] : memref<2x8x8x16xf32, #tpu.memory_space<vmem>>, vector<1x1x8x16xf32>
      %139 = vector.shape_cast %138 : vector<1x1x8x16xf32> to vector<8x16xf32>
      %140 = vector.shape_cast %137 : vector<8x16xf32> to vector<1x1x8x16xf32>
      tpu.vector_store %arg9[%c1_132, %c4_133, %c0_134, %c0_135], %140 {strides = array<i32>} : memref<2x8x8x16xf32, #tpu.memory_space<vmem>>, vector<1x1x8x16xf32>,
      %c0_136 = arith.constant 0 : index
      %c208 = arith.constant 208 : index
      %141 = vector.load %arg8[%c0_136, %c208] : memref<16x384xf32, #tpu.memory_space<vmem>>, vector<16x16xf32>
      %c5 = arith.constant 5 : index
      %c0_137 = arith.constant 0 : index
      %c0_138 = arith.constant 0 : index
      %142 = vector.load %arg10[%c5, %c0_137, %c0_138] : memref<8x16x16xf32, #tpu.memory_space<vmem>>, vector<1x16x16xf32>
      %143 = vector.shape_cast %142 : vector<1x16x16xf32> to vector<16x16xf32>
      %144 = vector.shape_cast %141 : vector<16x16xf32> to vector<1x16x16xf32>
      tpu.vector_store %arg10[%c5, %c0_137, %c0_138], %144 {strides = array<i32>} : memref<8x16x16xf32, #tpu.memory_space<vmem>>, vector<1x16x16xf32>,
      %c0_139 = arith.constant 0 : index
      %c336 = arith.constant 336 : index
      %145 = vector.load %arg8[%c0_139, %c336] : memref<16x384xf32, #tpu.memory_space<vmem>>, vector<16x16xf32>
      %c5_140 = arith.constant 5 : index
      %c0_141 = arith.constant 0 : index
      %c0_142 = arith.constant 0 : index
      %146 = vector.load %arg11[%c5_140, %c0_141, %c0_142] : memref<8x16x16xf32, #tpu.memory_space<vmem>>, vector<1x16x16xf32>
      %147 = vector.shape_cast %146 : vector<1x16x16xf32> to vector<16x16xf32>
      %148 = vector.shape_cast %145 : vector<16x16xf32> to vector<1x16x16xf32>
      tpu.vector_store %arg11[%c5_140, %c0_141, %c0_142], %148 {strides = array<i32>} : memref<8x16x16xf32, #tpu.memory_space<vmem>>, vector<1x16x16xf32>,
      %c0_143 = arith.constant 0 : index
      %c80_144 = arith.constant 80 : index
      %149 = vector.load %arg8[%c0_143, %c80_144] : memref<16x384xf32, #tpu.memory_space<vmem>>, vector<8x16xf32>
      %c0_145 = arith.constant 0 : index
      %c5_146 = arith.constant 5 : index
      %c0_147 = arith.constant 0 : index
      %c0_148 = arith.constant 0 : index
      %150 = vector.load %arg9[%c0_145, %c5_146, %c0_147, %c0_148] : memref<2x8x8x16xf32, #tpu.memory_space<vmem>>, vector<1x1x8x16xf32>
      %151 = vector.shape_cast %150 : vector<1x1x8x16xf32> to vector<8x16xf32>
      %152 = vector.shape_cast %149 : vector<8x16xf32> to vector<1x1x8x16xf32>
      tpu.vector_store %arg9[%c0_145, %c5_146, %c0_147, %c0_148], %152 {strides = array<i32>} : memref<2x8x8x16xf32, #tpu.memory_space<vmem>>, vector<1x1x8x16xf32>,
      %c8_149 = arith.constant 8 : index
      %c80_150 = arith.constant 80 : index
      %153 = vector.load %arg8[%c8_149, %c80_150] : memref<16x384xf32, #tpu.memory_space<vmem>>, vector<8x16xf32>
      %c1_151 = arith.constant 1 : index
      %c5_152 = arith.constant 5 : index
      %c0_153 = arith.constant 0 : index
      %c0_154 = arith.constant 0 : index
      %154 = vector.load %arg9[%c1_151, %c5_152, %c0_153, %c0_154] : memref<2x8x8x16xf32, #tpu.memory_space<vmem>>, vector<1x1x8x16xf32>
      %155 = vector.shape_cast %154 : vector<1x1x8x16xf32> to vector<8x16xf32>
      %156 = vector.shape_cast %153 : vector<8x16xf32> to vector<1x1x8x16xf32>
      tpu.vector_store %arg9[%c1_151, %c5_152, %c0_153, %c0_154], %156 {strides = array<i32>} : memref<2x8x8x16xf32, #tpu.memory_space<vmem>>, vector<1x1x8x16xf32>,
      %c0_155 = arith.constant 0 : index
      %c224 = arith.constant 224 : index
      %157 = vector.load %arg8[%c0_155, %c224] : memref<16x384xf32, #tpu.memory_space<vmem>>, vector<16x16xf32>
      %c6 = arith.constant 6 : index
      %c0_156 = arith.constant 0 : index
      %c0_157 = arith.constant 0 : index
      %158 = vector.load %arg10[%c6, %c0_156, %c0_157] : memref<8x16x16xf32, #tpu.memory_space<vmem>>, vector<1x16x16xf32>
      %159 = vector.shape_cast %158 : vector<1x16x16xf32> to vector<16x16xf32>
      %160 = vector.shape_cast %157 : vector<16x16xf32> to vector<1x16x16xf32>
      tpu.vector_store %arg10[%c6, %c0_156, %c0_157], %160 {strides = array<i32>} : memref<8x16x16xf32, #tpu.memory_space<vmem>>, vector<1x16x16xf32>,
      %c0_158 = arith.constant 0 : index
      %c352 = arith.constant 352 : index
      %161 = vector.load %arg8[%c0_158, %c352] : memref<16x384xf32, #tpu.memory_space<vmem>>, vector<16x16xf32>
      %c6_159 = arith.constant 6 : index
      %c0_160 = arith.constant 0 : index
      %c0_161 = arith.constant 0 : index
      %162 = vector.load %arg11[%c6_159, %c0_160, %c0_161] : memref<8x16x16xf32, #tpu.memory_space<vmem>>, vector<1x16x16xf32>
      %163 = vector.shape_cast %162 : vector<1x16x16xf32> to vector<16x16xf32>
      %164 = vector.shape_cast %161 : vector<16x16xf32> to vector<1x16x16xf32>
      tpu.vector_store %arg11[%c6_159, %c0_160, %c0_161], %164 {strides = array<i32>} : memref<8x16x16xf32, #tpu.memory_space<vmem>>, vector<1x16x16xf32>,
      %c0_162 = arith.constant 0 : index
      %c96_163 = arith.constant 96 : index
      %165 = vector.load %arg8[%c0_162, %c96_163] : memref<16x384xf32, #tpu.memory_space<vmem>>, vector<8x16xf32>
      %c0_164 = arith.constant 0 : index
      %c6_165 = arith.constant 6 : index
      %c0_166 = arith.constant 0 : index
      %c0_167 = arith.constant 0 : index
      %166 = vector.load %arg9[%c0_164, %c6_165, %c0_166, %c0_167] : memref<2x8x8x16xf32, #tpu.memory_space<vmem>>, vector<1x1x8x16xf32>
      %167 = vector.shape_cast %166 : vector<1x1x8x16xf32> to vector<8x16xf32>
      %168 = vector.shape_cast %165 : vector<8x16xf32> to vector<1x1x8x16xf32>
      tpu.vector_store %arg9[%c0_164, %c6_165, %c0_166, %c0_167], %168 {strides = array<i32>} : memref<2x8x8x16xf32, #tpu.memory_space<vmem>>, vector<1x1x8x16xf32>,
      %c8_168 = arith.constant 8 : index
      %c96_169 = arith.constant 96 : index
      %169 = vector.load %arg8[%c8_168, %c96_169] : memref<16x384xf32, #tpu.memory_space<vmem>>, vector<8x16xf32>
      %c1_170 = arith.constant 1 : index
      %c6_171 = arith.constant 6 : index
      %c0_172 = arith.constant 0 : index
      %c0_173 = arith.constant 0 : index
      %170 = vector.load %arg9[%c1_170, %c6_171, %c0_172, %c0_173] : memref<2x8x8x16xf32, #tpu.memory_space<vmem>>, vector<1x1x8x16xf32>
      %171 = vector.shape_cast %170 : vector<1x1x8x16xf32> to vector<8x16xf32>
      %172 = vector.shape_cast %169 : vector<8x16xf32> to vector<1x1x8x16xf32>
      tpu.vector_store %arg9[%c1_170, %c6_171, %c0_172, %c0_173], %172 {strides = array<i32>} : memref<2x8x8x16xf32, #tpu.memory_space<vmem>>, vector<1x1x8x16xf32>,
      %c0_174 = arith.constant 0 : index
      %c240 = arith.constant 240 : index
      %173 = vector.load %arg8[%c0_174, %c240] : memref<16x384xf32, #tpu.memory_space<vmem>>, vector<16x16xf32>
      %c7 = arith.constant 7 : index
      %c0_175 = arith.constant 0 : index
      %c0_176 = arith.constant 0 : index
      %174 = vector.load %arg10[%c7, %c0_175, %c0_176] : memref<8x16x16xf32, #tpu.memory_space<vmem>>, vector<1x16x16xf32>
      %175 = vector.shape_cast %174 : vector<1x16x16xf32> to vector<16x16xf32>
      %176 = vector.shape_cast %173 : vector<16x16xf32> to vector<1x16x16xf32>
      tpu.vector_store %arg10[%c7, %c0_175, %c0_176], %176 {strides = array<i32>} : memref<8x16x16xf32, #tpu.memory_space<vmem>>, vector<1x16x16xf32>,
      %c0_177 = arith.constant 0 : index
      %c368 = arith.constant 368 : index
      %177 = vector.load %arg8[%c0_177, %c368] : memref<16x384xf32, #tpu.memory_space<vmem>>, vector<16x16xf32>
      %c7_178 = arith.constant 7 : index
      %c0_179 = arith.constant 0 : index
      %c0_180 = arith.constant 0 : index
      %178 = vector.load %arg11[%c7_178, %c0_179, %c0_180] : memref<8x16x16xf32, #tpu.memory_space<vmem>>, vector<1x16x16xf32>
      %179 = vector.shape_cast %178 : vector<1x16x16xf32> to vector<16x16xf32>
      %180 = vector.shape_cast %177 : vector<16x16xf32> to vector<1x16x16xf32>
      tpu.vector_store %arg11[%c7_178, %c0_179, %c0_180], %180 {strides = array<i32>} : memref<8x16x16xf32, #tpu.memory_space<vmem>>, vector<1x16x16xf32>,
      %c0_181 = arith.constant 0 : index
      %c112_182 = arith.constant 112 : index
      %181 = vector.load %arg8[%c0_181, %c112_182] : memref<16x384xf32, #tpu.memory_space<vmem>>, vector<8x16xf32>
      %c0_183 = arith.constant 0 : index
      %c7_184 = arith.constant 7 : index
      %c0_185 = arith.constant 0 : index
      %c0_186 = arith.constant 0 : index
      %182 = vector.load %arg9[%c0_183, %c7_184, %c0_185, %c0_186] : memref<2x8x8x16xf32, #tpu.memory_space<vmem>>, vector<1x1x8x16xf32>
      %183 = vector.shape_cast %182 : vector<1x1x8x16xf32> to vector<8x16xf32>
      %184 = vector.shape_cast %181 : vector<8x16xf32> to vector<1x1x8x16xf32>
      tpu.vector_store %arg9[%c0_183, %c7_184, %c0_185, %c0_186], %184 {strides = array<i32>} : memref<2x8x8x16xf32, #tpu.memory_space<vmem>>, vector<1x1x8x16xf32>,
      %c8_187 = arith.constant 8 : index
      %c112_188 = arith.constant 112 : index
      %185 = vector.load %arg8[%c8_187, %c112_188] : memref<16x384xf32, #tpu.memory_space<vmem>>, vector<8x16xf32>
      %c1_189 = arith.constant 1 : index
      %c7_190 = arith.constant 7 : index
      %c0_191 = arith.constant 0 : index
      %c0_192 = arith.constant 0 : index
      %186 = vector.load %arg9[%c1_189, %c7_190, %c0_191, %c0_192] : memref<2x8x8x16xf32, #tpu.memory_space<vmem>>, vector<1x1x8x16xf32>
      %187 = vector.shape_cast %186 : vector<1x1x8x16xf32> to vector<8x16xf32>
      %188 = vector.shape_cast %185 : vector<8x16xf32> to vector<1x1x8x16xf32>
      tpu.vector_store %arg9[%c1_189, %c7_190, %c0_191, %c0_192], %188 {strides = array<i32>} : memref<2x8x8x16xf32, #tpu.memory_space<vmem>>, vector<1x1x8x16xf32>,
    } else {
    }
    %3 = arith.index_cast %arg1 : i32 to index
    %c0 = arith.constant 0 : index
    %c0_1 = arith.constant 0 : index
    %c0_2 = arith.constant 0 : index
    %4 = vector.load %arg9[%3, %c0, %c0_1, %c0_2] : memref<2x8x8x16xf32, #tpu.memory_space<vmem>>, vector<1x8x8x16xf32>
    %5 = vector.shape_cast %4 : vector<1x8x8x16xf32> to vector<8x8x16xf32>
    %c0_3 = arith.constant 0 : index
    %c0_4 = arith.constant 0 : index
    %c0_5 = arith.constant 0 : index
    %6 = vector.load %arg10[%c0_3, %c0_4, %c0_5] : memref<8x16x16xf32, #tpu.memory_space<vmem>>, vector<8x16x16xf32>
    %c0_6 = arith.constant 0 : index
    %c0_7 = arith.constant 0 : index
    %c0_8 = arith.constant 0 : index
    %7 = vector.load %arg11[%c0_6, %c0_7, %c0_8] : memref<8x16x16xf32, #tpu.memory_space<vmem>>, vector<8x16x16xf32>
    "tpu.trace_start"() <{level = 10 : i32, message = "hqd,hkd->hqk"}> : () -> ()
    %cst = arith.constant dense<0.000000e+00> : vector<8x8x16xf32>
    %8 = tpu.matmul %5, %6, %cst {dimension_numbers = #tpu.dot_dimension_numbers<[2], [2], [1], [1], [0, 0, 0, 1, 1, 1], [0], [0]>} : vector<8x8x16xf32>, vector<8x16x16xf32>, vector<8x8x16xf32> -> vector<8x8x16xf32>
    "tpu.trace_stop"() : () -> ()
    %cst_9 = arith.constant dense<0xFF800000> : vector<8x8xf32>
    %9 = vector.multi_reduction <maximumf>, %8, %cst_9 [2] : vector<8x8x16xf32> to vector<8x8xf32>
    %10 = vector.shape_cast %9 : vector<8x8xf32> to vector<8x8x1xf32>
    %11 = vector.broadcast %10 : vector<8x8x1xf32> to vector<8x8x16xf32>
    %12 = arith.subf %8, %11 : vector<8x8x16xf32>
    %13 = math.exp %12 : vector<8x8x16xf32>
    %cst_10 = arith.constant dense<0.000000e+00> : vector<8x8xf32>
    %14 = vector.multi_reduction <add>, %13, %cst_10 [2] : vector<8x8x16xf32> to vector<8x8xf32>
    %15 = vector.shape_cast %14 : vector<8x8xf32> to vector<8x8x1xf32>
    %16 = tpu.reciprocal %15 {approx = true} : vector<8x8x1xf32> -> vector<8x8x1xf32>
    %17 = vector.broadcast %16 : vector<8x8x1xf32> to vector<8x8x16xf32>
    %18 = arith.mulf %13, %17 : vector<8x8x16xf32>
    "tpu.trace_start"() <{level = 10 : i32, message = "hqk,hkd->hqd"}> : () -> ()
    %cst_11 = arith.constant dense<0.000000e+00> : vector<8x8x16xf32>
    %19 = tpu.matmul %18, %7, %cst_11 {dimension_numbers = #tpu.dot_dimension_numbers<[2], [1], [1], [2], [0, 0, 0, 1, 1, 2], [0], [0]>} : vector<8x8x16xf32>, vector<8x16x16xf32>, vector<8x8x16xf32> -> vector<8x8x16xf32>
    "tpu.trace_stop"() : () -> ()
    %20 = vector.extract_strided_slice %19 {offsets = [0, 0, 0], sizes = [1, 8, 16], strides = [1, 1, 1]} : vector<8x8x16xf32> to vector<1x8x16xf32>
    %21 = vector.shape_cast %20 : vector<1x8x16xf32> to vector<8x16xf32>
    %c0_12 = arith.constant 0 : index
    %c0_13 = arith.constant 0 : index
    %22 = vector.load %arg12[%c0_12, %c0_13] : memref<8x128xf32, #tpu.memory_space<vmem>>, vector<8x16xf32>
    tpu.vector_store %arg12[%c0_12, %c0_13], %21 {strides = array<i32>} : memref<8x128xf32, #tpu.memory_space<vmem>>, vector<8x16xf32>,
    %23 = vector.extract_strided_slice %19 {offsets = [1, 0, 0], sizes = [1, 8, 16], strides = [1, 1, 1]} : vector<8x8x16xf32> to vector<1x8x16xf32>
    %24 = vector.shape_cast %23 : vector<1x8x16xf32> to vector<8x16xf32>
    %c0_14 = arith.constant 0 : index
    %c16 = arith.constant 16 : index
    %25 = vector.load %arg12[%c0_14, %c16] : memref<8x128xf32, #tpu.memory_space<vmem>>, vector<8x16xf32>
    tpu.vector_store %arg12[%c0_14, %c16], %24 {strides = array<i32>} : memref<8x128xf32, #tpu.memory_space<vmem>>, vector<8x16xf32>,
    %26 = vector.extract_strided_slice %19 {offsets = [2, 0, 0], sizes = [1, 8, 16], strides = [1, 1, 1]} : vector<8x8x16xf32> to vector<1x8x16xf32>
    %27 = vector.shape_cast %26 : vector<1x8x16xf32> to vector<8x16xf32>
    %c0_15 = arith.constant 0 : index
    %c32 = arith.constant 32 : index
    %28 = vector.load %arg12[%c0_15, %c32] : memref<8x128xf32, #tpu.memory_space<vmem>>, vector<8x16xf32>
    tpu.vector_store %arg12[%c0_15, %c32], %27 {strides = array<i32>} : memref<8x128xf32, #tpu.memory_space<vmem>>, vector<8x16xf32>,
    %29 = vector.extract_strided_slice %19 {offsets = [3, 0, 0], sizes = [1, 8, 16], strides = [1, 1, 1]} : vector<8x8x16xf32> to vector<1x8x16xf32>
    %30 = vector.shape_cast %29 : vector<1x8x16xf32> to vector<8x16xf32>
    %c0_16 = arith.constant 0 : index
    %c48 = arith.constant 48 : index
    %31 = vector.load %arg12[%c0_16, %c48] : memref<8x128xf32, #tpu.memory_space<vmem>>, vector<8x16xf32>
    tpu.vector_store %arg12[%c0_16, %c48], %30 {strides = array<i32>} : memref<8x128xf32, #tpu.memory_space<vmem>>, vector<8x16xf32>,
    %32 = vector.extract_strided_slice %19 {offsets = [4, 0, 0], sizes = [1, 8, 16], strides = [1, 1, 1]} : vector<8x8x16xf32> to vector<1x8x16xf32>
    %33 = vector.shape_cast %32 : vector<1x8x16xf32> to vector<8x16xf32>
    %c0_17 = arith.constant 0 : index
    %c64 = arith.constant 64 : index
    %34 = vector.load %arg12[%c0_17, %c64] : memref<8x128xf32, #tpu.memory_space<vmem>>, vector<8x16xf32>
    tpu.vector_store %arg12[%c0_17, %c64], %33 {strides = array<i32>} : memref<8x128xf32, #tpu.memory_space<vmem>>, vector<8x16xf32>,
    %35 = vector.extract_strided_slice %19 {offsets = [5, 0, 0], sizes = [1, 8, 16], strides = [1, 1, 1]} : vector<8x8x16xf32> to vector<1x8x16xf32>
    %36 = vector.shape_cast %35 : vector<1x8x16xf32> to vector<8x16xf32>
    %c0_18 = arith.constant 0 : index
    %c80 = arith.constant 80 : index
    %37 = vector.load %arg12[%c0_18, %c80] : memref<8x128xf32, #tpu.memory_space<vmem>>, vector<8x16xf32>
    tpu.vector_store %arg12[%c0_18, %c80], %36 {strides = array<i32>} : memref<8x128xf32, #tpu.memory_space<vmem>>, vector<8x16xf32>,
    %38 = vector.extract_strided_slice %19 {offsets = [6, 0, 0], sizes = [1, 8, 16], strides = [1, 1, 1]} : vector<8x8x16xf32> to vector<1x8x16xf32>
    %39 = vector.shape_cast %38 : vector<1x8x16xf32> to vector<8x16xf32>
    %c0_19 = arith.constant 0 : index
    %c96 = arith.constant 96 : index
    %40 = vector.load %arg12[%c0_19, %c96] : memref<8x128xf32, #tpu.memory_space<vmem>>, vector<8x16xf32>
    tpu.vector_store %arg12[%c0_19, %c96], %39 {strides = array<i32>} : memref<8x128xf32, #tpu.memory_space<vmem>>, vector<8x16xf32>,
    %41 = vector.extract_strided_slice %19 {offsets = [7, 0, 0], sizes = [1, 8, 16], strides = [1, 1, 1]} : vector<8x8x16xf32> to vector<1x8x16xf32>
    %42 = vector.shape_cast %41 : vector<1x8x16xf32> to vector<8x16xf32>
    %c0_20 = arith.constant 0 : index
    %c112 = arith.constant 112 : index
    %43 = vector.load %arg12[%c0_20, %c112] : memref<8x128xf32, #tpu.memory_space<vmem>>, vector<8x16xf32>
    tpu.vector_store %arg12[%c0_20, %c112], %42 {strides = array<i32>} : memref<8x128xf32, #tpu.memory_space<vmem>>, vector<8x16xf32>,
    %c0_21 = arith.constant 0 : index
    %c0_22 = arith.constant 0 : index
    %44 = vector.load %arg12[%c0_21, %c0_22] : memref<8x128xf32, #tpu.memory_space<vmem>>, vector<8x128xf32>
    %c0_23 = arith.constant 0 : index
    %c0_24 = arith.constant 0 : index
    %45 = vector.load %arg5[%c0_23, %c0_24] : memref<128x128xf32, #tpu.memory_space<vmem>>, vector<128x128xf32>
    %cst_25 = arith.constant dense<0.000000e+00> : vector<8x128xf32>
    %46 = tpu.matmul %44, %45, %cst_25 {dimension_numbers = #tpu.dot_dimension_numbers<[1], [0], [0], [1], [0, 0, 1, 1], [], []>} : vector<8x128xf32>, vector<128x128xf32>, vector<8x128xf32> -> vector<8x128xf32>
    %c0_26 = arith.constant 0 : index
    %c0_27 = arith.constant 0 : index
    %47 = vector.load %arg6[%c0_26, %c0_27] : memref<1x128xf32, #tpu.memory_space<vmem>>, vector<1x128xf32>
    %48 = vector.broadcast %47 : vector<1x128xf32> to vector<8x128xf32>
    %49 = arith.addf %46, %48 : vector<8x128xf32>
    %c0_28 = arith.constant 0 : index
    %c0_29 = arith.constant 0 : index
    %c0_30 = arith.constant 0 : index
    %50 = vector.load %arg7[%c0_28, %c0_29, %c0_30] : memref<1x8x128xf32, #tpu.memory_space<vmem>>, vector<1x8x128xf32>
    %51 = vector.shape_cast %50 : vector<1x8x128xf32> to vector<8x128xf32>
    %52 = vector.shape_cast %49 : vector<8x128xf32> to vector<1x8x128xf32>
    tpu.vector_store %arg7[%c0_28, %c0_29, %c0_30], %52 {strides = array<i32>} : memref<1x8x128xf32, #tpu.memory_space<vmem>>, vector<1x8x128xf32>,
    return
  }
  func.func @transform_0(%arg0: i32, %arg1: i32) -> (i32, i32, i32) {
    %c0_i32 = arith.constant 0 : i32
    %c0_i32_0 = arith.constant 0 : i32
    %c0_i32_1 = arith.constant 0 : i32
    return %arg0, %c0_i32, %c0_i32_0 : i32, i32, i32
  }
  func.func @transform_1(%arg0: i32, %arg1: i32) -> (i32, i32) {
    %c0_i32 = arith.constant 0 : i32
    %c0_i32_0 = arith.constant 0 : i32
    %c0_i32_1 = arith.constant 0 : i32
    return %c0_i32, %c0_i32_0 : i32, i32
  }
  func.func @transform_2(%arg0: i32, %arg1: i32) -> (i32, i32) {
    %c0_i32 = arith.constant 0 : i32
    %c0_i32_0 = arith.constant 0 : i32
    %c0_i32_1 = arith.constant 0 : i32
    return %c0_i32, %c0_i32_0 : i32, i32
  }
  func.func @transform_3(%arg0: i32, %arg1: i32) -> (i32, i32) {
    %c0_i32 = arith.constant 0 : i32
    %c0_i32_0 = arith.constant 0 : i32
    %c0_i32_1 = arith.constant 0 : i32
    return %c0_i32, %c0_i32_0 : i32, i32
  }
  func.func @transform_4(%arg0: i32, %arg1: i32) -> (i32, i32) {
    %c0_i32 = arith.constant 0 : i32
    %c0_i32_0 = arith.constant 0 : i32
    %c0_i32_1 = arith.constant 0 : i32
    return %c0_i32, %c0_i32_0 : i32, i32
  }
  func.func @transform_5(%arg0: i32, %arg1: i32) -> (i32, i32, i32) {
    %c0_i32 = arith.constant 0 : i32
    %c0_i32_0 = arith.constant 0 : i32
    return %arg0, %arg1, %c0_i32 : i32, i32, i32
  }
}

</mosaic_0001>

<llo_original>
// kernel: tpu_custom_call.1
$region0: #{tpu_custom_call.1}
  #allocation0 [shape = 'u32[]', space=smem, size = 0x4, offset = 0x4, fixed_abs, tag = 'smem constant byte address 0x4 - core index']
  #allocation1 [shape = 'u32[144,128]{1,0:T(1,128)}', space=vmem, size = 0x12000, scoped, tag = 'internal scratch']
  #allocation2 [shape = 'f32[16,384]{1,0:T(8,128)}', space=vmem, size = 0x6000, scoped, tag = 'scratch operand']
  #allocation3 [shape = 'f32[2,8,8,16]{3,2,1,0:T(8,128)}', space=vmem, size = 0x10000, scoped, tag = 'scratch operand']
  #allocation4 [shape = 'f32[8,16,16]{2,1,0:T(8,128)}', space=vmem, size = 0x10000, scoped, tag = 'scratch operand']
  #allocation5 [shape = 'f32[8,16,16]{2,1,0:T(8,128)}', space=vmem, size = 0x10000, scoped, tag = 'scratch operand']
  #allocation6 [shape = 'f32[8,128]{1,0:T(8,128)}', space=vmem, size = 0x1000, scoped, tag = 'scratch operand']
  %s0 = inlined_call_operand.hbm [shape: f32[2,16,128], index: 0, kind: input, shape index: {}]
  %s1 = inlined_call_operand.hbm [shape: f32[128,384], index: 1, kind: input, shape index: {}]
  %s2 = inlined_call_operand.vmem [shape: f32[1,384], index: 2, kind: input, shape index: {}]
  %s3 = inlined_call_operand.hbm [shape: f32[128,128], index: 3, kind: input, shape index: {}]
  %s4 = inlined_call_operand.vmem [shape: f32[1,128], index: 4, kind: input, shape index: {}]
  %s5 = inlined_call_operand.hbm [shape: f32[2,16,128], index: 5, kind: output, shape index: {}]
  %s6 = sld [smem:[#allocation0]]
  $region69: #{tpu_custom_call.1} parent=0
    _
  %s8 = ssub.s32 1, %s6
  %s9 = scalar_select 0, %s8, %s6
  $region1: #{tpu_custom_call.1} parent=0
    #allocation7 [shape = 'u8[16384]{0}', space=vmem, size = 0x4000, scoped, tag = 'input window, operand 0']
    #allocation8 [shape = 's32[2]{0}', space=sflag, size = 0x8, scoped, tag = 'scoped memory for tpu_custom_call.1']
    #allocation9 [shape = 's32[2]{0}', space=sflag, size = 0x8, scoped, tag = 'scoped memory for tpu_custom_call.1']
    #allocation10 [shape = 'u8[196608]{0}', space=vmem, size = 0x30000, scoped, tag = 'input window, operand 1, single buffered']
    #allocation11 [shape = 's32[1]{0}', space=sflag, size = 0x4, scoped, tag = 'scoped memory for tpu_custom_call.1']
    #allocation12 [shape = 'u8[65536]{0}', space=vmem, size = 0x10000, scoped, tag = 'input window, operand 3, single buffered']
    #allocation13 [shape = 'u8[8192]{0}', space=vmem, size = 0x2000, scoped, tag = 'output window, operand 0']
    %10 = vsyncpa [#allocation8], 0
    %s11 = scalar_lea.sflag [#allocation8], 1
    %12 = vsyncpa %s11, 0
    %13 = vsyncpa [#allocation11], 0
    %14 = vsyncpa [#allocation9], 0
    %s15 = scalar_lea.sflag [#allocation9], 1
    %16 = vsyncpa %s15, 0
    loop: start=0, step=1, limit=6
    $region2: #{tpu_custom_call.1} parent=1 // loop_pre_header
      _
    $region3: #{tpu_custom_call.1} parent=1 // loop_header
      %s18 = sphi 0, %s22
      %p19 = scmp.ge.s32.totalorder %s18, 6
      %s25 = sphi 0, %s37
      %s26 = sphi 0, %s33
      %s27 = sphi 0, %s25
      %s28 = sphi 0, %s26
      %s29 = sphi 0, %s27
      %s30 = sphi 0, %s28
      %s40 = sphi 0, %s42
      %s43 = sphi 0, %s40
      %s44 = sphi 0, %s43
      %s60 = sphi 0, %s44
      %s64 = sphi 0, %s64
      %s66 = sphi 0, %s64
      %s67 = sphi 0, %s66
      %s81 = sphi 0, %s67
      %s85 = sphi 0, %s85
      %s87 = sphi 0, %s85
      %s88 = sphi 0, %s87
      %s102 = sphi 0, %s88
      %s106 = sphi 0, %s106
      %s108 = sphi 0, %s106
      %s109 = sphi 0, %s108
      %s123 = sphi 0, %s109
      %s127 = sphi 0, %s127
      %s129 = sphi 0, %s127
      %s130 = sphi 0, %s129
      %s144 = sphi 0, %s130
      %s152 = sphi 0, %s154
      %s155 = sphi 0, %s152
      %s156 = sphi 0, %s155
      %s172 = sphi 0, %s156
    $region4: #{tpu_custom_call.1} parent=1 // loop_header_branch
      %21 = sbr.rel (%p19) target = $region8
    $region5: #{tpu_custom_call.1} parent=1 // loop_body
      %s23 = ssub.s32 %s18, 1
      %s24 = ssub.s32 %s18, 2
      %s31 = sadd.s32 1, %s26
      %p32 = scmp.ge.s32.totalorder %s31, 2
      %s33 = scalar_select %p32, 0, %s31
      %s34 = sadd.s32 1, %s25
      %s35 = scalar_select %p32, %s34, %s25
      %p36 = scmp.ge.s32.totalorder %s35, 2
      %s37 = scalar_select %p36, 0, %s35
      %s38 = ssub.s32 %s25, %s37
      %p39 = scmp.eq.s32.totalorder %s38, 0
      %s41 = sadd.s32 %s40, 1
      %s42 = scalar_select %p39, %s40, %s41
      %p45 = pneg %p39
      %p46 = scmp.eq.s32.totalorder %s18, 3
      %p47 = por %p45, %p46
      %p48 = scmp.ne.s32.totalorder %s40, %s43
      %p49 = scmp.eq.s32.totalorder %s18, 0
      %p50 = por %p48, %p49
      %p51 = scmp.ne.s32.totalorder %s40, %s43
      %p52 = scmp.eq.s32.totalorder %s23, 3
      %p53 = por %p51, %p52
      %p54 = scmp.ne.s32.totalorder %s43, %s44
      %p55 = scmp.eq.s32.totalorder %s23, 0
      %p56 = por %p54, %p55
      %p57 = scmp.ne.s32.totalorder %s43, %s44
      %p58 = scmp.eq.s32.totalorder %s24, 3
      %p59 = por %p57, %p58
      %p61 = scmp.ne.s32.totalorder %s44, %s60
      %p62 = scmp.eq.s32.totalorder %s24, 0
      %p63 = por %p61, %p62
      %s65 = sadd.s32 %s64, 1
      %p68 = scmp.eq.s32.totalorder %s18, 3
      %p69 = scmp.ne.s32.totalorder %s64, %s66
      %p70 = scmp.eq.s32.totalorder %s18, 0
      %p71 = por %p69, %p70
      %p72 = scmp.ne.s32.totalorder %s64, %s66
      %p73 = scmp.eq.s32.totalorder %s23, 3
      %p74 = por %p72, %p73
      %p75 = scmp.ne.s32.totalorder %s66, %s67
      %p76 = scmp.eq.s32.totalorder %s23, 0
      %p77 = por %p75, %p76
      %p78 = scmp.ne.s32.totalorder %s66, %s67
      %p79 = scmp.eq.s32.totalorder %s24, 3
      %p80 = por %p78, %p79
      %p82 = scmp.ne.s32.totalorder %s67, %s81
      %p83 = scmp.eq.s32.totalorder %s24, 0
      %p84 = por %p82, %p83
      %s86 = sadd.s32 %s85, 1
      %p89 = scmp.eq.s32.totalorder %s18, 3
      %p90 = scmp.ne.s32.totalorder %s85, %s87
      %p91 = scmp.eq.s32.totalorder %s18, 0
      %p92 = por %p90, %p91
      %p93 = scmp.ne.s32.totalorder %s85, %s87
      %p94 = scmp.eq.s32.totalorder %s23, 3
      %p95 = por %p93, %p94
      %p96 = scmp.ne.s32.totalorder %s87, %s88
      %p97 = scmp.eq.s32.totalorder %s23, 0
      %p98 = por %p96, %p97
      %p99 = scmp.ne.s32.totalorder %s87, %s88
      %p100 = scmp.eq.s32.totalorder %s24, 3
      %p101 = por %p99, %p100
      %p103 = scmp.ne.s32.totalorder %s88, %s102
      %p104 = scmp.eq.s32.totalorder %s24, 0
      %p105 = por %p103, %p104
      %s107 = sadd.s32 %s106, 1
      %p110 = scmp.eq.s32.totalorder %s18, 3
      %p111 = scmp.ne.s32.totalorder %s106, %s108
      %p112 = scmp.eq.s32.totalorder %s18, 0
      %p113 = por %p111, %p112
      %p114 = scmp.ne.s32.totalorder %s106, %s108
      %p115 = scmp.eq.s32.totalorder %s23, 3
      %p116 = por %p114, %p115
      %p117 = scmp.ne.s32.totalorder %s108, %s109
      %p118 = scmp.eq.s32.totalorder %s23, 0
      %p119 = por %p117, %p118
      %p120 = scmp.ne.s32.totalorder %s108, %s109
      %p121 = scmp.eq.s32.totalorder %s24, 3
      %p122 = por %p120, %p121
      %p124 = scmp.ne.s32.totalorder %s109, %s123
      %p125 = scmp.eq.s32.totalorder %s24, 0
      %p126 = por %p124, %p125
      %s128 = sadd.s32 %s127, 1
      %p131 = scmp.eq.s32.totalorder %s18, 3
      %p132 = scmp.ne.s32.totalorder %s127, %s129
      %p133 = scmp.eq.s32.totalorder %s18, 0
      %p134 = por %p132, %p133
      %p135 = scmp.ne.s32.totalorder %s127, %s129
      %p136 = scmp.eq.s32.totalorder %s23, 3
      %p137 = por %p135, %p136
      %p138 = scmp.ne.s32.totalorder %s129, %s130
      %p139 = scmp.eq.s32.totalorder %s23, 0
      %p140 = por %p138, %p139
      %p141 = scmp.ne.s32.totalorder %s129, %s130
      %p142 = scmp.eq.s32.totalorder %s24, 3
      %p143 = por %p141, %p142
      %p145 = scmp.ne.s32.totalorder %s130, %s144
      %p146 = scmp.eq.s32.totalorder %s24, 0
      %p147 = por %p145, %p146
      %s148 = ssub.s32 %s25, %s37
      %s149 = ssub.s32 %s26, %s33
      %s150 = sor.u32 %s148, %s149
      %p151 = scmp.eq.s32.totalorder %s150, 0
      %s153 = sadd.s32 %s152, 1
      %s154 = scalar_select %p151, %s152, %s153
      %p157 = pneg %p151
      %p158 = scmp.eq.s32.totalorder %s18, 3
      %p159 = por %p157, %p158
      %p160 = scmp.ne.s32.totalorder %s152, %s155
      %p161 = scmp.eq.s32.totalorder %s18, 0
      %p162 = por %p160, %p161
      %p163 = scmp.ne.s32.totalorder %s152, %s155
      %p164 = scmp.eq.s32.totalorder %s23, 3
      %p165 = por %p163, %p164
      %p166 = scmp.ne.s32.totalorder %s155, %s156
      %p167 = scmp.eq.s32.totalorder %s23, 0
      %p168 = por %p166, %p167
      %p169 = scmp.ne.s32.totalorder %s155, %s156
      %p170 = scmp.eq.s32.totalorder %s24, 3
      %p171 = por %p169, %p170
      %p173 = scmp.ne.s32.totalorder %s156, %s172
      %p174 = scmp.eq.s32.totalorder %s24, 0
      %p175 = por %p173, %p174
      %p176 = scmp.le.s32.totalorder 1, %s18
      %p177 = scmp.lt.s32.totalorder %s18, 5
      %p178 = pnand %p176, %p177
      %p179 = pneg %p178
      // Predicated region
      $region9: #{tpu_custom_call.1} parent=5 // pred_check
        _
      $region10: #{tpu_custom_call.1} parent=5 // pred_check_branch
        %181 = sbr.rel (%p178) target = $region12
      $region11: #{tpu_custom_call.1} parent=5 // pred_region
        %s182 = ssub.s32 %s18, 1
        // Predicated region
        $region13: #{tpu_custom_call.1} parent=11 // pred_check
          %p183 = pneg %p77
        $region14: #{tpu_custom_call.1} parent=11 // pred_check_branch
          %185 = sbr.rel (%p183) target = $region16
        $region15: #{tpu_custom_call.1} parent=11 // pred_region
          %s187 = ssub.s32 6144, 6144
          %188 = vsyncadd [#allocation11], %s187
          %s189 = sshll.u32 [#allocation10], 4
          %s190 = int_to_ptr.vmem [resolvable:$true] %s189
          %195 = dma.hbm_to_vmem [thread:$0]  %s1, 6144, %s190, [#allocation11], 384, 384, 24
        $region16: #{tpu_custom_call.1} parent=11 // pred_fallthru
          _
        // Predicated region
        $region17: #{tpu_custom_call.1} parent=11 // pred_check
          %p196 = pneg %p98
        $region18: #{tpu_custom_call.1} parent=11 // pred_check_branch
          %198 = sbr.rel (%p196) target = $region20
        $region19: #{tpu_custom_call.1} parent=11 // pred_region
          _
        $region20: #{tpu_custom_call.1} parent=11 // pred_fallthru
          _
        // Predicated region
        $region21: #{tpu_custom_call.1} parent=11 // pred_check
          %p199 = pneg %p119
        $region22: #{tpu_custom_call.1} parent=11 // pred_check_branch
          %201 = sbr.rel (%p199) target = $region24
        $region23: #{tpu_custom_call.1} parent=11 // pred_region
          %s203 = ssub.s32 2048, 2048
          %204 = vsyncadd [#allocation11], %s203
          %s205 = sshll.u32 [#allocation12], 4
          %s206 = int_to_ptr.vmem [resolvable:$true] %s205
          %211 = dma.hbm_to_vmem [thread:$0]  %s3, 2048, %s206, [#allocation11], 128, 128, 8
        $region24: #{tpu_custom_call.1} parent=11 // pred_fallthru
          _
        // Predicated region
        $region25: #{tpu_custom_call.1} parent=11 // pred_check
          %p212 = pneg %p140
        $region26: #{tpu_custom_call.1} parent=11 // pred_check_branch
          %214 = sbr.rel (%p212) target = $region28
        $region27: #{tpu_custom_call.1} parent=11 // pred_region
          _
        $region28: #{tpu_custom_call.1} parent=11 // pred_fallthru
          _
      $region12: #{tpu_custom_call.1} parent=5 // pred_fallthru
        _
      %p215 = scmp.lt.s32.totalorder %s18, 4
      // Predicated region
      $region29: #{tpu_custom_call.1} parent=5 // pred_check
        %p216 = pneg %p215
      $region30: #{tpu_custom_call.1} parent=5 // pred_check_branch
        %218 = sbr.rel (%p216) target = $region32
      $region31: #{tpu_custom_call.1} parent=5 // pred_region
        // Predicated region
        $region33: #{tpu_custom_call.1} parent=31 // pred_check
          %p219 = pneg %p50
        $region34: #{tpu_custom_call.1} parent=31 // pred_check_branch
          %221 = sbr.rel (%p219) target = $region36
        $region35: #{tpu_custom_call.1} parent=31 // pred_region
          %s222 = sand.u32 %s40, 1
          %s223 = scalar_lea.sflag [#allocation8], %s222
          %s224 = sand.u32 %s40, 1
          %s225 = smul.addr %s224, 16
          %s226 = scalar_lea.vmem [#allocation7], %s225
          %s228 = ssub.s32 256, 256
          %229 = vsyncadd %s223, %s228
          %s230 = smul.addr %s25, 2
          %s231 = smul.addr %s230, 128
          %s232 = scalar_lea.hbm %s0, %s231
          %s233 = sshll.u32 %s226, 4
          %s234 = int_to_ptr.vmem [resolvable:$true] %s233
          %239 = dma.hbm_to_vmem [thread:$0]  %s232, 256, %s234, %s223, 128, 128, 8
        $region36: #{tpu_custom_call.1} parent=31 // pred_fallthru
          _
      $region32: #{tpu_custom_call.1} parent=5 // pred_fallthru
        _
      %p240 = scmp.le.s32.totalorder 1, %s18
      %p241 = scmp.lt.s32.totalorder %s18, 5
      %p242 = pnand %p240, %p241
      %p243 = pneg %p242
      // Predicated region
      $region37: #{tpu_custom_call.1} parent=5 // pred_check
        _
      $region38: #{tpu_custom_call.1} parent=5 // pred_check_branch
        %245 = sbr.rel (%p242) target = $region40
      $region39: #{tpu_custom_call.1} parent=5 // pred_region
        %s246 = ssub.s32 %s18, 1
        %s247 = sand.u32 %s43, 1
        %s248 = scalar_lea.sflag [#allocation8], %s247
        %s249 = sand.u32 %s43, 1
        %s250 = smul.addr %s249, 16
        %s251 = scalar_lea.vmem [#allocation7], %s250
        // Predicated region
        $region41: #{tpu_custom_call.1} parent=39 // pred_check
          %p252 = pneg %p56
        $region42: #{tpu_custom_call.1} parent=39 // pred_check_branch
          %254 = sbr.rel (%p252) target = $region44
        $region43: #{tpu_custom_call.1} parent=39 // pred_region
          %255 = dma.done %s248, 256
        $region44: #{tpu_custom_call.1} parent=39 // pred_fallthru
          _
        // Predicated region
        $region45: #{tpu_custom_call.1} parent=39 // pred_check
          %p256 = pneg %p77
        $region46: #{tpu_custom_call.1} parent=39 // pred_check_branch
          %258 = sbr.rel (%p256) target = $region48
        $region47: #{tpu_custom_call.1} parent=39 // pred_region
          %259 = dma.done [#allocation11], 6144
        $region48: #{tpu_custom_call.1} parent=39 // pred_fallthru
          _
        // Predicated region
        $region49: #{tpu_custom_call.1} parent=39 // pred_check
          %p260 = pneg %p119
        $region50: #{tpu_custom_call.1} parent=39 // pred_check_branch
          %262 = sbr.rel (%p260) target = $region52
        $region51: #{tpu_custom_call.1} parent=39 // pred_region
          %263 = dma.done [#allocation11], 2048
        $region52: #{tpu_custom_call.1} parent=39 // pred_fallthru
          _
        %s264 = sand.u32 %s43, 1
        %s265 = scalar_lea.sflag [#allocation8], %s264
        %s266 = sand.u32 %s43, 1
        %s267 = smul.addr %s266, 16
        %s268 = scalar_lea.vmem [#allocation7], %s267
        %p269 = pneg %p56
        %p270 = pneg %p53
        %p271 = pneg %p77
        %p272 = pneg %p74
        %p273 = pneg %p98
        %p274 = pneg %p95
        %p275 = pneg %p119
        %p276 = pneg %p116
        %p277 = pneg %p140
        %p278 = pneg %p137
        %p279 = pneg %p168
        %p280 = pneg %p165
        %s281 = sand.u32 %s155, 1
        %s282 = scalar_lea.sflag [#allocation9], %s281
        %s283 = sand.u32 %s155, 1
        %s284 = smul.addr %s283, 8
        %s285 = scalar_lea.vmem [#allocation13], %s284
        %p286 = scmp.eq.s32.totalorder %s28, 0
        // Predicated region
        $region53: #{tpu_custom_call.1} parent=39 // pred_check
          %p287 = pneg %p286
        $region54: #{tpu_custom_call.1} parent=39 // pred_check_branch
          %289 = sbr.rel (%p287) target = $region56
        $region55: #{tpu_custom_call.1} parent=39 // pred_region
          %v290 = vld [vmem:[%s251] sm:$0xff]
          %v291 = vld [vmem:[%s251 + $0x8] sm:$0xff]
          %v292 = vld [vmem:[#allocation10] sm:$0xff]
          %v293 = vld [vmem:[#allocation10 + $0x8] sm:$0xff]
          %v294 = vld [vmem:[#allocation10 + $0x10] sm:$0xff]
          %v295 = vld [vmem:[#allocation10 + $0x18] sm:$0xff]
          %v296 = vld [vmem:[#allocation10 + $0x20] sm:$0xff]
          %v297 = vld [vmem:[#allocation10 + $0x28] sm:$0xff]
          %v298 = vld [vmem:[#allocation10 + $0x30] sm:$0xff]
          %v299 = vld [vmem:[#allocation10 + $0x38] sm:$0xff]
          %v300 = vld [vmem:[#allocation10 + $0x40] sm:$0xff]
          %v301 = vld [vmem:[#allocation10 + $0x48] sm:$0xff]
          %v302 = vld [vmem:[#allocation10 + $0x50] sm:$0xff]
          %v303 = vld [vmem:[#allocation10 + $0x58] sm:$0xff]
          %v304 = vld [vmem:[#allocation10 + $0x60] sm:$0xff]
          %v305 = vld [vmem:[#allocation10 + $0x68] sm:$0xff]
          %v306 = vld [vmem:[#allocation10 + $0x70] sm:$0xff]
          %v307 = vld [vmem:[#allocation10 + $0x78] sm:$0xff]
          %v308 = vld [vmem:[#allocation10 + $0x80] sm:$0xff]
          %v309 = vld [vmem:[#allocation10 + $0x88] sm:$0xff]
          %v310 = vld [vmem:[#allocation10 + $0x90] sm:$0xff]
          %v311 = vld [vmem:[#allocation10 + $0x98] sm:$0xff]
          %v312 = vld [vmem:[#allocation10 + $0xa0] sm:$0xff]
          %v313 = vld [vmem:[#allocation10 + $0xa8] sm:$0xff]
          %v314 = vld [vmem:[#allocation10 + $0xb0] sm:$0xff]
          %v315 = vld [vmem:[#allocation10 + $0xb8] sm:$0xff]
          %v316 = vld [vmem:[#allocation10 + $0xc0] sm:$0xff]
          %v317 = vld [vmem:[#allocation10 + $0xc8] sm:$0xff]
          %v318 = vld [vmem:[#allocation10 + $0xd0] sm:$0xff]
          %v319 = vld [vmem:[#allocation10 + $0xd8] sm:$0xff]
          %v320 = vld [vmem:[#allocation10 + $0xe0] sm:$0xff]
          %v321 = vld [vmem:[#allocation10 + $0xe8] sm:$0xff]
          %v322 = vld [vmem:[#allocation10 + $0xf0] sm:$0xff]
          %v323 = vld [vmem:[#allocation10 + $0xf8] sm:$0xff]
          %v324 = vld [vmem:[#allocation10 + $0x100] sm:$0xff]
          %v325 = vld [vmem:[#allocation10 + $0x108] sm:$0xff]
          %v326 = vld [vmem:[#allocation10 + $0x110] sm:$0xff]
          %v327 = vld [vmem:[#allocation10 + $0x118] sm:$0xff]
          %v328 = vld [vmem:[#allocation10 + $0x120] sm:$0xff]
          %v329 = vld [vmem:[#allocation10 + $0x128] sm:$0xff]
          %v330 = vld [vmem:[#allocation10 + $0x130] sm:$0xff]
          %v331 = vld [vmem:[#allocation10 + $0x138] sm:$0xff]
          %v332 = vld [vmem:[#allocation10 + $0x140] sm:$0xff]
          %v333 = vld [vmem:[#allocation10 + $0x148] sm:$0xff]
          %v334 = vld [vmem:[#allocation10 + $0x150] sm:$0xff]
          %v335 = vld [vmem:[#allocation10 + $0x158] sm:$0xff]
          %v336 = vld [vmem:[#allocation10 + $0x160] sm:$0xff]
          %v337 = vld [vmem:[#allocation10 + $0x168] sm:$0xff]
          %v338 = vld [vmem:[#allocation10 + $0x170] sm:$0xff]
          %v339 = vld [vmem:[#allocation10 + $0x178] sm:$0xff]
          %v340 = vld [vmem:[%s2] sm:$0x7]
          %v342 = vlaneseq
          %v343 = vshrl.u32 %v342, 7
          %v344 = vsub.s32 0, %v343
          %v345 = vrot.slane %v340, %v344
          %v346 = vlaneseq
          %v347 = vshrl.u32 %v346, 7
          %v348 = vsub.s32 1, %v347
          %v349 = vrot.slane %v340, %v348
          %v350 = vlaneseq
          %v351 = vshrl.u32 %v350, 7
          %v352 = vsub.s32 2, %v351
          %v353 = vrot.slane %v340, %v352
          %357 = vmatprep.subr.mxu0 %v293
          %358 = vmatpush1.msra.mxu0 %v292
          %359 = vmatprep.subr.mxu0 %v296
          %360 = vmatpush1.msra.mxu0 %v295
          %361 = vmatprep.subr.mxu0 %v299
          %362 = vmatpush1.msra.mxu0 %v298
          %363 = vmatprep.subr.mxu0 %v302
          %364 = vmatpush1.msra.mxu0 %v301
          %365 = vmatprep.subr.mxu0 %v305
          %366 = vmatpush1.msra.mxu0 %v304
          %367 = vmatprep.subr.mxu0 %v308
          %368 = vmatpush1.msra.mxu0 %v307
          %369 = vmatprep.subr.mxu0 %v311
          %370 = vmatpush1.msra.mxu0 %v310
          %371 = vmatprep.subr.mxu0 %v314
          %372 = vmatpush1.msra.mxu0 %v313
          %373 = vmatprep.subr.mxu0 %v317
          %374 = vmatpush1.msra.mxu0 %v316
          %375 = vmatprep.subr.mxu0 %v320
          %376 = vmatpush1.msra.mxu0 %v319
          %377 = vmatprep.subr.mxu0 %v323
          %378 = vmatpush1.msra.mxu0 %v322
          %379 = vmatprep.subr.mxu0 %v326
          %380 = vmatpush1.msra.mxu0 %v325
          %381 = vmatprep.subr.mxu0 %v329
          %382 = vmatpush1.msra.mxu0 %v328
          %383 = vmatprep.subr.mxu0 %v332
          %384 = vmatpush1.msra.mxu0 %v331
          %385 = vmatprep.subr.mxu0 %v335
          %386 = vmatpush1.msra.mxu0 %v334
          %387 = vmatprep.subr.mxu0 %v338
          %388 = vmatpush1.msra.mxu0 %v337
          %389 = vmatprep.subr.mxu0 0.0
          %390 = vmatpush1.msra.mxu0 0.0
          %391 = vmatprep.subr.mxu0 0.0
          %392 = vmatpush1.msra.mxu0 0.0
          %393 = vmatprep.subr.mxu0 0.0
          %394 = vmatpush1.msra.mxu0 0.0
          %395 = vmatprep.subr.mxu0 0.0
          %396 = vmatpush1.msra.mxu0 0.0
          %397 = vmatprep.subr.mxu0 0.0
          %398 = vmatpush1.msra.mxu0 0.0
          %399 = vmatprep.subr.mxu0 0.0
          %400 = vmatpush1.msra.mxu0 0.0
          %401 = vmatprep.subr.mxu0 0.0
          %402 = vmatpush1.msra.mxu0 0.0
          %403 = vmatprep.subr.mxu0 0.0
          %404 = vmatpush1.msra.mxu0 0.0
          %405 = vmatprep.subr.mxu0 0.0
          %406 = vmatpush1.msra.mxu0 0.0
          %407 = vmatprep.subr.mxu0 0.0
          %408 = vmatpush1.msra.mxu0 0.0
          %409 = vmatprep.subr.mxu0 0.0
          %410 = vmatpush1.msra.mxu0 0.0
          %411 = vmatprep.subr.mxu0 0.0
          %412 = vmatpush1.msra.mxu0 0.0
          %413 = vmatprep.subr.mxu0 0.0
          %414 = vmatpush1.msra.mxu0 0.0
          %415 = vmatprep.subr.mxu0 0.0
          %416 = vmatpush1.msra.mxu0 0.0
          %417 = vmatprep.subr.mxu0 0.0
          %418 = vmatpush1.msra.mxu0 0.0
          %419 = vmatprep.subr.mxu0 0.0
          %420 = vmatpush1.msra.mxu0 0.0
          %421 = vmatprep.mubr.f32.mxu0 0.0
          %422 = vmatmul.mubr.f32.gmra.mrb[0].mxu0 %v290
          %v423 = vpop.f32.mrb[0].mxu0
          %v424 = vadd.f32 %v345, %v423
          %v425 = vpop.f32.mrb[0].mxu0
          %v426 = vadd.f32 %v349, %v425
          %427 = vmatprep.mubr.f32.mxu0 0.0
          %428 = vmatmul.mubr.f32.gmra.mrb[0].mxu0 %v291
          %v429 = vpop.f32.mrb[0].mxu0
          %v430 = vadd.f32 %v345, %v429
          %v431 = vpop.f32.mrb[0].mxu0
          %v432 = vadd.f32 %v349, %v431
          %433 = vdwg.mxu0
          %434 = vmatprep.subr.mxu0 0.0
          %435 = vmatpush1.msra.mxu0 %v294
          %436 = vmatprep.subr.mxu0 0.0
          %437 = vmatpush1.msra.mxu0 %v297
          %438 = vmatprep.subr.mxu0 0.0
          %439 = vmatpush1.msra.mxu0 %v300
          %440 = vmatprep.subr.mxu0 0.0
          %441 = vmatpush1.msra.mxu0 %v303
          %442 = vmatprep.subr.mxu0 0.0
          %443 = vmatpush1.msra.mxu0 %v306
          %444 = vmatprep.subr.mxu0 0.0
          %445 = vmatpush1.msra.mxu0 %v309
          %446 = vmatprep.subr.mxu0 0.0
          %447 = vmatpush1.msra.mxu0 %v312
          %448 = vmatprep.subr.mxu0 0.0
          %449 = vmatpush1.msra.mxu0 %v315
          %450 = vmatprep.subr.mxu0 0.0
          %451 = vmatpush1.msra.mxu0 %v318
          %452 = vmatprep.subr.mxu0 0.0
          %453 = vmatpush1.msra.mxu0 %v321
          %454 = vmatprep.subr.mxu0 0.0
          %455 = vmatpush1.msra.mxu0 %v324
          %456 = vmatprep.subr.mxu0 0.0
          %457 = vmatpush1.msra.mxu0 %v327
          %458 = vmatprep.subr.mxu0 0.0
          %459 = vmatpush1.msra.mxu0 %v330
          %460 = vmatprep.subr.mxu0 0.0
          %461 = vmatpush1.msra.mxu0 %v333
          %462 = vmatprep.subr.mxu0 0.0
          %463 = vmatpush1.msra.mxu0 %v336
          %464 = vmatprep.subr.mxu0 0.0
          %465 = vmatpush1.msra.mxu0 %v339
          %466 = vmatprep.subr.mxu0 0.0
          %467 = vmatpush1.msra.mxu0 0.0
          %468 = vmatprep.subr.mxu0 0.0
          %469 = vmatpush1.msra.mxu0 0.0
          %470 = vmatprep.subr.mxu0 0.0
          %471 = vmatpush1.msra.mxu0 0.0
          %472 = vmatprep.subr.mxu0 0.0
          %473 = vmatpush1.msra.mxu0 0.0
          %474 = vmatprep.subr.mxu0 0.0
          %475 = vmatpush1.msra.mxu0 0.0
          %476 = vmatprep.subr.mxu0 0.0
          %477 = vmatpush1.msra.mxu0 0.0
          %478 = vmatprep.subr.mxu0 0.0
          %479 = vmatpush1.msra.mxu0 0.0
          %480 = vmatprep.subr.mxu0 0.0
          %481 = vmatpush1.msra.mxu0 0.0
          %482 = vmatprep.subr.mxu0 0.0
          %483 = vmatpush1.msra.mxu0 0.0
          %484 = vmatprep.subr.mxu0 0.0
          %485 = vmatpush1.msra.mxu0 0.0
          %486 = vmatprep.subr.mxu0 0.0
          %487 = vmatpush1.msra.mxu0 0.0
          %488 = vmatprep.subr.mxu0 0.0
          %489 = vmatpush1.msra.mxu0 0.0
          %490 = vmatprep.subr.mxu0 0.0
          %491 = vmatpush1.msra.mxu0 0.0
          %492 = vmatprep.subr.mxu0 0.0
          %493 = vmatpush1.msra.mxu0 0.0
          %494 = vmatprep.subr.mxu0 0.0
          %495 = vmatpush1.msra.mxu0 0.0
          %496 = vmatprep.subr.mxu0 0.0
          %497 = vmatpush1.msra.mxu0 0.0
          %498 = vmatprep.mubr.f32.mxu0 0.0
          %499 = vmatmul.mubr.f32.gmra.mrb[0].mxu0 %v290
          %v500 = vpop.f32.mrb[0].mxu0
          %v501 = vadd.f32 %v353, %v500
          %v502 = vpop.f32.mrb[0].mxu0
          %503 = vmatprep.mubr.f32.mxu0 0.0
          %504 = vmatmul.mubr.f32.gmra.mrb[0].mxu0 %v291
          %v505 = vpop.f32.mrb[0].mxu0
          %v506 = vadd.f32 %v353, %v505
          %v507 = vpop.f32.mrb[0].mxu0
          %508 = vdwg.mxu0
          %509 = vst [vmem:[#allocation2] sm:$0xff] %v424
          %510 = vst [vmem:[#allocation2 + $0x8] sm:$0xff] %v426
          %511 = vst [vmem:[#allocation2 + $0x10] sm:$0xff] %v501
          %512 = vst [vmem:[#allocation2 + $0x18] sm:$0xff] %v430
          %513 = vst [vmem:[#allocation2 + $0x20] sm:$0xff] %v432
          %514 = vst [vmem:[#allocation2 + $0x28] sm:$0xff] %v506
          %v515 = vld [vmem:[#allocation2 + $0x8] sm:$0xff]
          %v516 = vld [vmem:[#allocation2 + $0x20] sm:$0xff]
          %vm517 = vcmask 130048
          %518 = vst.msk [vmem:[#allocation4] sm:$0xff] %vm517, %v515
          %519 = vst.msk [vmem:[#allocation4 + $0x8] sm:$0xff] %vm517, %v516
          %v520 = vld [vmem:[#allocation2 + $0x10] sm:$0xff]
          %v521 = vld [vmem:[#allocation2 + $0x28] sm:$0xff]
          %522 = vst.msk [vmem:[#allocation5] sm:$0xff] %vm517, %v520
          %523 = vst.msk [vmem:[#allocation5 + $0x8] sm:$0xff] %vm517, %v521
          %v524 = vld [vmem:[#allocation2] sm:$0xff]
          %525 = vst.msk [vmem:[#allocation3] sm:$0xff] %vm517, %v524
          %v526 = vld [vmem:[#allocation2 + $0x18] sm:$0xff]
          %s527 = scalar_lea.vmem [#allocation3], 64
          %528 = vst.msk [vmem:[%s527] sm:$0xff] %vm517, %v526
          %v529 = vld [vmem:[#allocation2 + $0x8] sm:$0xff]
          %v530 = vld [vmem:[#allocation2 + $0x20] sm:$0xff]
          %533 = vrot.lane.b32.xlu0 %v529, 112
          %v534 = vpop.permute.xlu0 %533
          %535 = vrot.lane.b32.xlu0 %v530, 112
          %v536 = vpop.permute.xlu0 %535
          %s539 = scalar_lea.vmem [#allocation4], 16
          %540 = vst.msk [vmem:[%s539] sm:$0xff] %vm517, %v534
          %541 = vst.msk [vmem:[%s539 + $0x8] sm:$0xff] %vm517, %v536
          %v542 = vld [vmem:[#allocation2 + $0x10] sm:$0xff]
          %v543 = vld [vmem:[#allocation2 + $0x28] sm:$0xff]
          %546 = vrot.lane.b32.xlu0 %v542, 112
          %v547 = vpop.permute.xlu0 %546
          %548 = vrot.lane.b32.xlu0 %v543, 112
          %v549 = vpop.permute.xlu0 %548
          %s552 = scalar_lea.vmem [#allocation5], 16
          %553 = vst.msk [vmem:[%s552] sm:$0xff] %vm517, %v547
          %554 = vst.msk [vmem:[%s552 + $0x8] sm:$0xff] %vm517, %v549
          %v555 = vld [vmem:[#allocation2] sm:$0xff]
          %557 = vrot.lane.b32.xlu0 %v555, 112
          %v558 = vpop.permute.xlu0 %557
          %s560 = scalar_lea.vmem [#allocation3], 8
          %561 = vst.msk [vmem:[%s560] sm:$0xff] %vm517, %v558
          %v562 = vld [vmem:[#allocation2 + $0x18] sm:$0xff]
          %564 = vrot.lane.b32.xlu0 %v562, 112
          %v565 = vpop.permute.xlu0 %564
          %s567 = scalar_lea.vmem [#allocation3], 72
          %568 = vst.msk [vmem:[%s567] sm:$0xff] %vm517, %v565
          %v569 = vld [vmem:[#allocation2 + $0x8] sm:$0xff]
          %v570 = vld [vmem:[#allocation2 + $0x20] sm:$0xff]
          %573 = vrot.lane.b32.xlu0 %v569, 96
          %v574 = vpop.permute.xlu0 %573
          %575 = vrot.lane.b32.xlu0 %v570, 96
          %v576 = vpop.permute.xlu0 %575
          %s579 = scalar_lea.vmem [#allocation4], 32
          %580 = vst.msk [vmem:[%s579] sm:$0xff] %vm517, %v574
          %581 = vst.msk [vmem:[%s579 + $0x8] sm:$0xff] %vm517, %v576
          %v582 = vld [vmem:[#allocation2 + $0x10] sm:$0xff]
          %v583 = vld [vmem:[#allocation2 + $0x28] sm:$0xff]
          %586 = vrot.lane.b32.xlu0 %v582, 96
          %v587 = vpop.permute.xlu0 %586
          %588 = vrot.lane.b32.xlu0 %v583, 96
          %v589 = vpop.permute.xlu0 %588
          %s592 = scalar_lea.vmem [#allocation5], 32
          %593 = vst.msk [vmem:[%s592] sm:$0xff] %vm517, %v587
          %594 = vst.msk [vmem:[%s592 + $0x8] sm:$0xff] %vm517, %v589
          %v595 = vld [vmem:[#allocation2] sm:$0xff]
          %597 = vrot.lane.b32.xlu0 %v595, 96
          %v598 = vpop.permute.xlu0 %597
          %s600 = scalar_lea.vmem [#allocation3], 16
          %601 = vst.msk [vmem:[%s600] sm:$0xff] %vm517, %v598
          %v602 = vld [vmem:[#allocation2 + $0x18] sm:$0xff]
          %604 = vrot.lane.b32.xlu0 %v602, 96
          %v605 = vpop.permute.xlu0 %604
          %s607 = scalar_lea.vmem [#allocation3], 80
          %608 = vst.msk [vmem:[%s607] sm:$0xff] %vm517, %v605
          %v609 = vld [vmem:[#allocation2 + $0x8] sm:$0xff]
          %v610 = vld [vmem:[#allocation2 + $0x20] sm:$0xff]
          %613 = vrot.lane.b32.xlu0 %v609, 80
          %v614 = vpop.permute.xlu0 %613
          %615 = vrot.lane.b32.xlu0 %v610, 80
          %v616 = vpop.permute.xlu0 %615
          %s619 = scalar_lea.vmem [#allocation4], 48
          %620 = vst.msk [vmem:[%s619] sm:$0xff] %vm517, %v614
          %621 = vst.msk [vmem:[%s619 + $0x8] sm:$0xff] %vm517, %v616
          %v622 = vld [vmem:[#allocation2 + $0x10] sm:$0xff]
          %v623 = vld [vmem:[#allocation2 + $0x28] sm:$0xff]
          %626 = vrot.lane.b32.xlu0 %v622, 80
          %v627 = vpop.permute.xlu0 %626
          %628 = vrot.lane.b32.xlu0 %v623, 80
          %v629 = vpop.permute.xlu0 %628
          %s632 = scalar_lea.vmem [#allocation5], 48
          %633 = vst.msk [vmem:[%s632] sm:$0xff] %vm517, %v627
          %634 = vst.msk [vmem:[%s632 + $0x8] sm:$0xff] %vm517, %v629
          %v635 = vld [vmem:[#allocation2] sm:$0xff]
          %637 = vrot.lane.b32.xlu0 %v635, 80
          %v638 = vpop.permute.xlu0 %637
          %s640 = scalar_lea.vmem [#allocation3], 24
          %641 = vst.msk [vmem:[%s640] sm:$0xff] %vm517, %v638
          %v642 = vld [vmem:[#allocation2 + $0x18] sm:$0xff]
          %644 = vrot.lane.b32.xlu0 %v642, 80
          %v645 = vpop.permute.xlu0 %644
          %s647 = scalar_lea.vmem [#allocation3], 88
          %648 = vst.msk [vmem:[%s647] sm:$0xff] %vm517, %v645
          %v649 = vld [vmem:[#allocation2 + $0x8] sm:$0xff]
          %v650 = vld [vmem:[#allocation2 + $0x20] sm:$0xff]
          %653 = vrot.lane.b32.xlu0 %v649, 64
          %v654 = vpop.permute.xlu0 %653
          %655 = vrot.lane.b32.xlu0 %v650, 64
          %v656 = vpop.permute.xlu0 %655
          %s659 = scalar_lea.vmem [#allocation4], 64
          %660 = vst.msk [vmem:[%s659] sm:$0xff] %vm517, %v654
          %661 = vst.msk [vmem:[%s659 + $0x8] sm:$0xff] %vm517, %v656
          %v662 = vld [vmem:[#allocation2 + $0x10] sm:$0xff]
          %v663 = vld [vmem:[#allocation2 + $0x28] sm:$0xff]
          %666 = vrot.lane.b32.xlu0 %v662, 64
          %v667 = vpop.permute.xlu0 %666
          %668 = vrot.lane.b32.xlu0 %v663, 64
          %v669 = vpop.permute.xlu0 %668
          %s672 = scalar_lea.vmem [#allocation5], 64
          %673 = vst.msk [vmem:[%s672] sm:$0xff] %vm517, %v667
          %674 = vst.msk [vmem:[%s672 + $0x8] sm:$0xff] %vm517, %v669
          %v675 = vld [vmem:[#allocation2] sm:$0xff]
          %677 = vrot.lane.b32.xlu0 %v675, 64
          %v678 = vpop.permute.xlu0 %677
          %s680 = scalar_lea.vmem [#allocation3], 32
          %681 = vst.msk [vmem:[%s680] sm:$0xff] %vm517, %v678
          %v682 = vld [vmem:[#allocation2 + $0x18] sm:$0xff]
          %684 = vrot.lane.b32.xlu0 %v682, 64
          %v685 = vpop.permute.xlu0 %684
          %s687 = scalar_lea.vmem [#allocation3], 96
          %688 = vst.msk [vmem:[%s687] sm:$0xff] %vm517, %v685
          %v689 = vld [vmem:[#allocation2 + $0x8] sm:$0xff]
          %v690 = vld [vmem:[#allocation2 + $0x20] sm:$0xff]
          %693 = vrot.lane.b32.xlu0 %v689, 48
          %v694 = vpop.permute.xlu0 %693
          %695 = vrot.lane.b32.xlu0 %v690, 48
          %v696 = vpop.permute.xlu0 %695
          %s699 = scalar_lea.vmem [#allocation4], 80
          %700 = vst.msk [vmem:[%s699] sm:$0xff] %vm517, %v694
          %701 = vst.msk [vmem:[%s699 + $0x8] sm:$0xff] %vm517, %v696
          %v702 = vld [vmem:[#allocation2 + $0x10] sm:$0xff]
          %v703 = vld [vmem:[#allocation2 + $0x28] sm:$0xff]
          %706 = vrot.lane.b32.xlu0 %v702, 48
          %v707 = vpop.permute.xlu0 %706
          %708 = vrot.lane.b32.xlu0 %v703, 48
          %v709 = vpop.permute.xlu0 %708
          %s712 = scalar_lea.vmem [#allocation5], 80
          %713 = vst.msk [vmem:[%s712] sm:$0xff] %vm517, %v707
          %714 = vst.msk [vmem:[%s712 + $0x8] sm:$0xff] %vm517, %v709
          %v715 = vld [vmem:[#allocation2] sm:$0xff]
          %717 = vrot.lane.b32.xlu0 %v715, 48
          %v718 = vpop.permute.xlu0 %717
          %s720 = scalar_lea.vmem [#allocation3], 40
          %721 = vst.msk [vmem:[%s720] sm:$0xff] %vm517, %v718
          %v722 = vld [vmem:[#allocation2 + $0x18] sm:$0xff]
          %724 = vrot.lane.b32.xlu0 %v722, 48
          %v725 = vpop.permute.xlu0 %724
          %s727 = scalar_lea.vmem [#allocation3], 104
          %728 = vst.msk [vmem:[%s727] sm:$0xff] %vm517, %v725
          %v729 = vld [vmem:[#allocation2 + $0x8] sm:$0xff]
          %v730 = vld [vmem:[#allocation2 + $0x20] sm:$0xff]
          %733 = vrot.lane.b32.xlu0 %v729, 32
          %v734 = vpop.permute.xlu0 %733
          %735 = vrot.lane.b32.xlu0 %v730, 32
          %v736 = vpop.permute.xlu0 %735
          %s739 = scalar_lea.vmem [#allocation4], 96
          %740 = vst.msk [vmem:[%s739] sm:$0xff] %vm517, %v734
          %741 = vst.msk [vmem:[%s739 + $0x8] sm:$0xff] %vm517, %v736
          %v742 = vld [vmem:[#allocation2 + $0x10] sm:$0xff]
          %v743 = vld [vmem:[#allocation2 + $0x28] sm:$0xff]
          %746 = vrot.lane.b32.xlu0 %v742, 32
          %v747 = vpop.permute.xlu0 %746
          %748 = vrot.lane.b32.xlu0 %v743, 32
          %v749 = vpop.permute.xlu0 %748
          %s752 = scalar_lea.vmem [#allocation5], 96
          %753 = vst.msk [vmem:[%s752] sm:$0xff] %vm517, %v747
          %754 = vst.msk [vmem:[%s752 + $0x8] sm:$0xff] %vm517, %v749
          %v755 = vld [vmem:[#allocation2] sm:$0xff]
          %757 = vrot.lane.b32.xlu0 %v755, 32
          %v758 = vpop.permute.xlu0 %757
          %s760 = scalar_lea.vmem [#allocation3], 48
          %761 = vst.msk [vmem:[%s760] sm:$0xff] %vm517, %v758
          %v762 = vld [vmem:[#allocation2 + $0x18] sm:$0xff]
          %764 = vrot.lane.b32.xlu0 %v762, 32
          %v765 = vpop.permute.xlu0 %764
          %s767 = scalar_lea.vmem [#allocation3], 112
          %768 = vst.msk [vmem:[%s767] sm:$0xff] %vm517, %v765
          %v769 = vld [vmem:[#allocation2 + $0x8] sm:$0xff]
          %v770 = vld [vmem:[#allocation2 + $0x20] sm:$0xff]
          %773 = vrot.lane.b32.xlu0 %v769, 16
          %v774 = vpop.permute.xlu0 %773
          %775 = vrot.lane.b32.xlu0 %v770, 16
          %v776 = vpop.permute.xlu0 %775
          %s779 = scalar_lea.vmem [#allocation4], 112
          %780 = vst.msk [vmem:[%s779] sm:$0xff] %vm517, %v774
          %781 = vst.msk [vmem:[%s779 + $0x8] sm:$0xff] %vm517, %v776
          %v782 = vld [vmem:[#allocation2 + $0x10] sm:$0xff]
          %v783 = vld [vmem:[#allocation2 + $0x28] sm:$0xff]
          %786 = vrot.lane.b32.xlu0 %v782, 16
          %v787 = vpop.permute.xlu0 %786
          %788 = vrot.lane.b32.xlu0 %v783, 16
          %v789 = vpop.permute.xlu0 %788
          %s792 = scalar_lea.vmem [#allocation5], 112
          %793 = vst.msk [vmem:[%s792] sm:$0xff] %vm517, %v787
          %794 = vst.msk [vmem:[%s792 + $0x8] sm:$0xff] %vm517, %v789
          %v795 = vld [vmem:[#allocation2] sm:$0xff]
          %797 = vrot.lane.b32.xlu0 %v795, 16
          %v798 = vpop.permute.xlu0 %797
          %s800 = scalar_lea.vmem [#allocation3], 56
          %801 = vst.msk [vmem:[%s800] sm:$0xff] %vm517, %v798
          %v802 = vld [vmem:[#allocation2 + $0x18] sm:$0xff]
          %804 = vrot.lane.b32.xlu0 %v802, 16
          %v805 = vpop.permute.xlu0 %804
          %s807 = scalar_lea.vmem [#allocation3], 120
          %808 = vst.msk [vmem:[%s807] sm:$0xff] %vm517, %v805
        $region56: #{tpu_custom_call.1} parent=39 // pred_fallthru
          _
        %s809 = smul.u32 %s28, 64
        %s810 = scalar_lea.vmem [#allocation3], %s809
        %v811 = vld [vmem:[%s810] sm:$0xff]
        %v812 = vld [vmem:[%s810 + $0x8] sm:$0xff]
        %v813 = vld [vmem:[%s810 + $0x10] sm:$0xff]
        %v814 = vld [vmem:[%s810 + $0x18] sm:$0xff]
        %v815 = vld [vmem:[%s810 + $0x20] sm:$0xff]
        %v816 = vld [vmem:[%s810 + $0x28] sm:$0xff]
        %v817 = vld [vmem:[%s810 + $0x30] sm:$0xff]
        %v818 = vld [vmem:[%s810 + $0x38] sm:$0xff]
        %v819 = vld [vmem:[#allocation4] sm:$0xff]
        %v820 = vld [vmem:[#allocation4 + $0x8] sm:$0xff]
        %v821 = vld [vmem:[#allocation4 + $0x10] sm:$0xff]
        %v822 = vld [vmem:[#allocation4 + $0x18] sm:$0xff]
        %v823 = vld [vmem:[#allocation4 + $0x20] sm:$0xff]
        %v824 = vld [vmem:[#allocation4 + $0x28] sm:$0xff]
        %v825 = vld [vmem:[#allocation4 + $0x30] sm:$0xff]
        %v826 = vld [vmem:[#allocation4 + $0x38] sm:$0xff]
        %v827 = vld [vmem:[#allocation4 + $0x40] sm:$0xff]
        %v828 = vld [vmem:[#allocation4 + $0x48] sm:$0xff]
        %v829 = vld [vmem:[#allocation4 + $0x50] sm:$0xff]
        %v830 = vld [vmem:[#allocation4 + $0x58] sm:$0xff]
        %v831 = vld [vmem:[#allocation4 + $0x60] sm:$0xff]
        %v832 = vld [vmem:[#allocation4 + $0x68] sm:$0xff]
        %v833 = vld [vmem:[#allocation4 + $0x70] sm:$0xff]
        %v834 = vld [vmem:[#allocation4 + $0x78] sm:$0xff]
        %v835 = vld [vmem:[#allocation5] sm:$0xff]
        %v836 = vld [vmem:[#allocation5 + $0x8] sm:$0xff]
        %v837 = vld [vmem:[#allocation5 + $0x10] sm:$0xff]
        %v838 = vld [vmem:[#allocation5 + $0x18] sm:$0xff]
        %v839 = vld [vmem:[#allocation5 + $0x20] sm:$0xff]
        %v840 = vld [vmem:[#allocation5 + $0x28] sm:$0xff]
        %v841 = vld [vmem:[#allocation5 + $0x30] sm:$0xff]
        %v842 = vld [vmem:[#allocation5 + $0x38] sm:$0xff]
        %v843 = vld [vmem:[#allocation5 + $0x40] sm:$0xff]
        %v844 = vld [vmem:[#allocation5 + $0x48] sm:$0xff]
        %v845 = vld [vmem:[#allocation5 + $0x50] sm:$0xff]
        %v846 = vld [vmem:[#allocation5 + $0x58] sm:$0xff]
        %v847 = vld [vmem:[#allocation5 + $0x60] sm:$0xff]
        %v848 = vld [vmem:[#allocation5 + $0x68] sm:$0xff]
        %v849 = vld [vmem:[#allocation5 + $0x70] sm:$0xff]
        %v850 = vld [vmem:[#allocation5 + $0x78] sm:$0xff]
        %vm851 = vcmask 130048
        %v853 = vsel %vm851, %v811, 0
        %v856 = vsel %vm851, %v819, 0
        %v859 = vsel %vm851, %v820, 0
        %861 = vmatprep.subr.mxu0 0.0
        %862 = vmatpush1.xpose.msra.mxu0 %v856
        %863 = vmatprep.subr.mxu0 0.0
        %864 = vmatpush1.xpose.msra.mxu0 %v859
        %865 = vmatprep.subr.mxu0 0.0
        %866 = vmatpush1.xpose.msra.mxu0 0.0
        %867 = vmatprep.subr.mxu0 0.0
        %868 = vmatpush1.xpose.msra.mxu0 0.0
        %869 = vmatprep.subr.mxu0 0.0
        %870 = vmatpush1.xpose.msra.mxu0 0.0
        %871 = vmatprep.subr.mxu0 0.0
        %872 = vmatpush1.xpose.msra.mxu0 0.0
        %873 = vmatprep.subr.mxu0 0.0
        %874 = vmatpush1.xpose.msra.mxu0 0.0
        %875 = vmatprep.subr.mxu0 0.0
        %876 = vmatpush1.xpose.msra.mxu0 0.0
        %877 = vmatprep.subr.mxu0 0.0
        %878 = vmatpush1.xpose.msra.mxu0 0.0
        %879 = vmatprep.subr.mxu0 0.0
        %880 = vmatpush1.xpose.msra.mxu0 0.0
        %881 = vmatprep.subr.mxu0 0.0
        %882 = vmatpush1.xpose.msra.mxu0 0.0
        %883 = vmatprep.subr.mxu0 0.0
        %884 = vmatpush1.xpose.msra.mxu0 0.0
        %885 = vmatprep.subr.mxu0 0.0
        %886 = vmatpush1.xpose.msra.mxu0 0.0
        %887 = vmatprep.subr.mxu0 0.0
        %888 = vmatpush1.xpose.msra.mxu0 0.0
        %889 = vmatprep.subr.mxu0 0.0
        %890 = vmatpush1.xpose.msra.mxu0 0.0
        %891 = vmatprep.subr.mxu0 0.0
        %892 = vmatpush1.xpose.msra.mxu0 0.0
        %893 = vmatprep.subr.mxu0 0.0
        %894 = vmatpush1.xpose.msra.mxu0 0.0
        %895 = vmatprep.subr.mxu0 0.0
        %896 = vmatpush1.xpose.msra.mxu0 0.0
        %897 = vmatprep.subr.mxu0 0.0
        %898 = vmatpush1.xpose.msra.mxu0 0.0
        %899 = vmatprep.subr.mxu0 0.0
        %900 = vmatpush1.xpose.msra.mxu0 0.0
        %901 = vmatprep.subr.mxu0 0.0
        %902 = vmatpush1.xpose.msra.mxu0 0.0
        %903 = vmatprep.subr.mxu0 0.0
        %904 = vmatpush1.xpose.msra.mxu0 0.0
        %905 = vmatprep.subr.mxu0 0.0
        %906 = vmatpush1.xpose.msra.mxu0 0.0
        %907 = vmatprep.subr.mxu0 0.0
        %908 = vmatpush1.xpose.msra.mxu0 0.0
        %909 = vmatprep.subr.mxu0 0.0
        %910 = vmatpush1.xpose.msra.mxu0 0.0
        %911 = vmatprep.subr.mxu0 0.0
        %912 = vmatpush1.xpose.msra.mxu0 0.0
        %913 = vmatprep.subr.mxu0 0.0
        %914 = vmatpush1.xpose.msra.mxu0 0.0
        %915 = vmatprep.subr.mxu0 0.0
        %916 = vmatpush1.xpose.msra.mxu0 0.0
        %917 = vmatprep.subr.mxu0 0.0
        %918 = vmatpush1.xpose.msra.mxu0 0.0
        %919 = vmatprep.subr.mxu0 0.0
        %920 = vmatpush1.xpose.msra.mxu0 0.0
        %921 = vmatprep.subr.mxu0 0.0
        %922 = vmatpush1.xpose.msra.mxu0 0.0
        %923 = vmatprep.subr.mxu0 0.0
        %924 = vmatpush1.xpose.msra.mxu0 0.0
        %925 = vmatprep.mubr.f32.mxu0 0.0
        %926 = vmatmul.mubr.f32.gmra.mrb[0].mxu0 %v853
        %v927 = vpop.f32.mrb[0].mxu0
        %v928 = vadd.f32 0.0, %v927
        %v929 = vpop.f32.mrb[0].mxu0
        %930 = vdwg.mxu0
        %v932 = vsel %vm851, %v812, 0
        %v935 = vsel %vm851, %v821, 0
        %v938 = vsel %vm851, %v822, 0
        %940 = vmatprep.subr.mxu0 0.0
        %941 = vmatpush1.xpose.msra.mxu0 %v935
        %942 = vmatprep.subr.mxu0 0.0
        %943 = vmatpush1.xpose.msra.mxu0 %v938
        %944 = vmatprep.subr.mxu0 0.0
        %945 = vmatpush1.xpose.msra.mxu0 0.0
        %946 = vmatprep.subr.mxu0 0.0
        %947 = vmatpush1.xpose.msra.mxu0 0.0
        %948 = vmatprep.subr.mxu0 0.0
        %949 = vmatpush1.xpose.msra.mxu0 0.0
        %950 = vmatprep.subr.mxu0 0.0
        %951 = vmatpush1.xpose.msra.mxu0 0.0
        %952 = vmatprep.subr.mxu0 0.0
        %953 = vmatpush1.xpose.msra.mxu0 0.0
        %954 = vmatprep.subr.mxu0 0.0
        %955 = vmatpush1.xpose.msra.mxu0 0.0
        %956 = vmatprep.subr.mxu0 0.0
        %957 = vmatpush1.xpose.msra.mxu0 0.0
        %958 = vmatprep.subr.mxu0 0.0
        %959 = vmatpush1.xpose.msra.mxu0 0.0
        %960 = vmatprep.subr.mxu0 0.0
        %961 = vmatpush1.xpose.msra.mxu0 0.0
        %962 = vmatprep.subr.mxu0 0.0
        %963 = vmatpush1.xpose.msra.mxu0 0.0
        %964 = vmatprep.subr.mxu0 0.0
        %965 = vmatpush1.xpose.msra.mxu0 0.0
        %966 = vmatprep.subr.mxu0 0.0
        %967 = vmatpush1.xpose.msra.mxu0 0.0
        %968 = vmatprep.subr.mxu0 0.0
        %969 = vmatpush1.xpose.msra.mxu0 0.0
        %970 = vmatprep.subr.mxu0 0.0
        %971 = vmatpush1.xpose.msra.mxu0 0.0
        %972 = vmatprep.subr.mxu0 0.0
        %973 = vmatpush1.xpose.msra.mxu0 0.0
        %974 = vmatprep.subr.mxu0 0.0
        %975 = vmatpush1.xpose.msra.mxu0 0.0
        %976 = vmatprep.subr.mxu0 0.0
        %977 = vmatpush1.xpose.msra.mxu0 0.0
        %978 = vmatprep.subr.mxu0 0.0
        %979 = vmatpush1.xpose.msra.mxu0 0.0
        %980 = vmatprep.subr.mxu0 0.0
        %981 = vmatpush1.xpose.msra.mxu0 0.0
        %982 = vmatprep.subr.mxu0 0.0
        %983 = vmatpush1.xpose.msra.mxu0 0.0
        %984 = vmatprep.subr.mxu0 0.0
        %985 = vmatpush1.xpose.msra.mxu0 0.0
        %986 = vmatprep.subr.mxu0 0.0
        %987 = vmatpush1.xpose.msra.mxu0 0.0
        %988 = vmatprep.subr.mxu0 0.0
        %989 = vmatpush1.xpose.msra.mxu0 0.0
        %990 = vmatprep.subr.mxu0 0.0
        %991 = vmatpush1.xpose.msra.mxu0 0.0
        %992 = vmatprep.subr.mxu0 0.0
        %993 = vmatpush1.xpose.msra.mxu0 0.0
        %994 = vmatprep.subr.mxu0 0.0
        %995 = vmatpush1.xpose.msra.mxu0 0.0
        %996 = vmatprep.subr.mxu0 0.0
        %997 = vmatpush1.xpose.msra.mxu0 0.0
        %998 = vmatprep.subr.mxu0 0.0
        %999 = vmatpush1.xpose.msra.mxu0 0.0
        %1000 = vmatprep.subr.mxu0 0.0
        %1001 = vmatpush1.xpose.msra.mxu0 0.0
        %1002 = vmatprep.subr.mxu0 0.0
        %1003 = vmatpush1.xpose.msra.mxu0 0.0
        %1004 = vmatprep.mubr.f32.mxu0 0.0
        %1005 = vmatmul.mubr.f32.gmra.mrb[0].mxu0 %v932
        %v1006 = vpop.f32.mrb[0].mxu0
        %v1007 = vadd.f32 0.0, %v1006
        %v1008 = vpop.f32.mrb[0].mxu0
        %1009 = vdwg.mxu0
        %v1011 = vsel %vm851, %v813, 0
        %v1014 = vsel %vm851, %v823, 0
        %v1017 = vsel %vm851, %v824, 0
        %1019 = vmatprep.subr.mxu0 0.0
        %1020 = vmatpush1.xpose.msra.mxu0 %v1014
        %1021 = vmatprep.subr.mxu0 0.0
        %1022 = vmatpush1.xpose.msra.mxu0 %v1017
        %1023 = vmatprep.subr.mxu0 0.0
        %1024 = vmatpush1.xpose.msra.mxu0 0.0
        %1025 = vmatprep.subr.mxu0 0.0
        %1026 = vmatpush1.xpose.msra.mxu0 0.0
        %1027 = vmatprep.subr.mxu0 0.0
        %1028 = vmatpush1.xpose.msra.mxu0 0.0
        %1029 = vmatprep.subr.mxu0 0.0
        %1030 = vmatpush1.xpose.msra.mxu0 0.0
        %1031 = vmatprep.subr.mxu0 0.0
        %1032 = vmatpush1.xpose.msra.mxu0 0.0
        %1033 = vmatprep.subr.mxu0 0.0
        %1034 = vmatpush1.xpose.msra.mxu0 0.0
        %1035 = vmatprep.subr.mxu0 0.0
        %1036 = vmatpush1.xpose.msra.mxu0 0.0
        %1037 = vmatprep.subr.mxu0 0.0
        %1038 = vmatpush1.xpose.msra.mxu0 0.0
        %1039 = vmatprep.subr.mxu0 0.0
        %1040 = vmatpush1.xpose.msra.mxu0 0.0
        %1041 = vmatprep.subr.mxu0 0.0
        %1042 = vmatpush1.xpose.msra.mxu0 0.0
        %1043 = vmatprep.subr.mxu0 0.0
        %1044 = vmatpush1.xpose.msra.mxu0 0.0
        %1045 = vmatprep.subr.mxu0 0.0
        %1046 = vmatpush1.xpose.msra.mxu0 0.0
        %1047 = vmatprep.subr.mxu0 0.0
        %1048 = vmatpush1.xpose.msra.mxu0 0.0
        %1049 = vmatprep.subr.mxu0 0.0
        %1050 = vmatpush1.xpose.msra.mxu0 0.0
        %1051 = vmatprep.subr.mxu0 0.0
        %1052 = vmatpush1.xpose.msra.mxu0 0.0
        %1053 = vmatprep.subr.mxu0 0.0
        %1054 = vmatpush1.xpose.msra.mxu0 0.0
        %1055 = vmatprep.subr.mxu0 0.0
        %1056 = vmatpush1.xpose.msra.mxu0 0.0
        %1057 = vmatprep.subr.mxu0 0.0
        %1058 = vmatpush1.xpose.msra.mxu0 0.0
        %1059 = vmatprep.subr.mxu0 0.0
        %1060 = vmatpush1.xpose.msra.mxu0 0.0
        %1061 = vmatprep.subr.mxu0 0.0
        %1062 = vmatpush1.xpose.msra.mxu0 0.0
        %1063 = vmatprep.subr.mxu0 0.0
        %1064 = vmatpush1.xpose.msra.mxu0 0.0
        %1065 = vmatprep.subr.mxu0 0.0
        %1066 = vmatpush1.xpose.msra.mxu0 0.0
        %1067 = vmatprep.subr.mxu0 0.0
        %1068 = vmatpush1.xpose.msra.mxu0 0.0
        %1069 = vmatprep.subr.mxu0 0.0
        %1070 = vmatpush1.xpose.msra.mxu0 0.0
        %1071 = vmatprep.subr.mxu0 0.0
        %1072 = vmatpush1.xpose.msra.mxu0 0.0
        %1073 = vmatprep.subr.mxu0 0.0
        %1074 = vmatpush1.xpose.msra.mxu0 0.0
        %1075 = vmatprep.subr.mxu0 0.0
        %1076 = vmatpush1.xpose.msra.mxu0 0.0
        %1077 = vmatprep.subr.mxu0 0.0
        %1078 = vmatpush1.xpose.msra.mxu0 0.0
        %1079 = vmatprep.subr.mxu0 0.0
        %1080 = vmatpush1.xpose.msra.mxu0 0.0
        %1081 = vmatprep.subr.mxu0 0.0
        %1082 = vmatpush1.xpose.msra.mxu0 0.0
        %1083 = vmatprep.mubr.f32.mxu0 0.0
        %1084 = vmatmul.mubr.f32.gmra.mrb[0].mxu0 %v1011
        %v1085 = vpop.f32.mrb[0].mxu0
        %v1086 = vadd.f32 0.0, %v1085
        %v1087 = vpop.f32.mrb[0].mxu0
        %1088 = vdwg.mxu0
        %v1090 = vsel %vm851, %v814, 0
        %v1093 = vsel %vm851, %v825, 0
        %v1096 = vsel %vm851, %v826, 0
        %1098 = vmatprep.subr.mxu0 0.0
        %1099 = vmatpush1.xpose.msra.mxu0 %v1093
        %1100 = vmatprep.subr.mxu0 0.0
        %1101 = vmatpush1.xpose.msra.mxu0 %v1096
        %1102 = vmatprep.subr.mxu0 0.0
        %1103 = vmatpush1.xpose.msra.mxu0 0.0
        %1104 = vmatprep.subr.mxu0 0.0
        %1105 = vmatpush1.xpose.msra.mxu0 0.0
        %1106 = vmatprep.subr.mxu0 0.0
        %1107 = vmatpush1.xpose.msra.mxu0 0.0
        %1108 = vmatprep.subr.mxu0 0.0
        %1109 = vmatpush1.xpose.msra.mxu0 0.0
        %1110 = vmatprep.subr.mxu0 0.0
        %1111 = vmatpush1.xpose.msra.mxu0 0.0
        %1112 = vmatprep.subr.mxu0 0.0
        %1113 = vmatpush1.xpose.msra.mxu0 0.0
        %1114 = vmatprep.subr.mxu0 0.0
        %1115 = vmatpush1.xpose.msra.mxu0 0.0
        %1116 = vmatprep.subr.mxu0 0.0
        %1117 = vmatpush1.xpose.msra.mxu0 0.0
        %1118 = vmatprep.subr.mxu0 0.0
        %1119 = vmatpush1.xpose.msra.mxu0 0.0
        %1120 = vmatprep.subr.mxu0 0.0
        %1121 = vmatpush1.xpose.msra.mxu0 0.0
        %1122 = vmatprep.subr.mxu0 0.0
        %1123 = vmatpush1.xpose.msra.mxu0 0.0
        %1124 = vmatprep.subr.mxu0 0.0
        %1125 = vmatpush1.xpose.msra.mxu0 0.0
        %1126 = vmatprep.subr.mxu0 0.0
        %1127 = vmatpush1.xpose.msra.mxu0 0.0
        %1128 = vmatprep.subr.mxu0 0.0
        %1129 = vmatpush1.xpose.msra.mxu0 0.0
        %1130 = vmatprep.subr.mxu0 0.0
        %1131 = vmatpush1.xpose.msra.mxu0 0.0
        %1132 = vmatprep.subr.mxu0 0.0
        %1133 = vmatpush1.xpose.msra.mxu0 0.0
        %1134 = vmatprep.subr.mxu0 0.0
        %1135 = vmatpush1.xpose.msra.mxu0 0.0
        %1136 = vmatprep.subr.mxu0 0.0
        %1137 = vmatpush1.xpose.msra.mxu0 0.0
        %1138 = vmatprep.subr.mxu0 0.0
        %1139 = vmatpush1.xpose.msra.mxu0 0.0
        %1140 = vmatprep.subr.mxu0 0.0
        %1141 = vmatpush1.xpose.msra.mxu0 0.0
        %1142 = vmatprep.subr.mxu0 0.0
        %1143 = vmatpush1.xpose.msra.mxu0 0.0
        %1144 = vmatprep.subr.mxu0 0.0
        %1145 = vmatpush1.xpose.msra.mxu0 0.0
        %1146 = vmatprep.subr.mxu0 0.0
        %1147 = vmatpush1.xpose.msra.mxu0 0.0
        %1148 = vmatprep.subr.mxu0 0.0
        %1149 = vmatpush1.xpose.msra.mxu0 0.0
        %1150 = vmatprep.subr.mxu0 0.0
        %1151 = vmatpush1.xpose.msra.mxu0 0.0
        %1152 = vmatprep.subr.mxu0 0.0
        %1153 = vmatpush1.xpose.msra.mxu0 0.0
        %1154 = vmatprep.subr.mxu0 0.0
        %1155 = vmatpush1.xpose.msra.mxu0 0.0
        %1156 = vmatprep.subr.mxu0 0.0
        %1157 = vmatpush1.xpose.msra.mxu0 0.0
        %1158 = vmatprep.subr.mxu0 0.0
        %1159 = vmatpush1.xpose.msra.mxu0 0.0
        %1160 = vmatprep.subr.mxu0 0.0
        %1161 = vmatpush1.xpose.msra.mxu0 0.0
        %1162 = vmatprep.mubr.f32.mxu0 0.0
        %1163 = vmatmul.mubr.f32.gmra.mrb[0].mxu0 %v1090
        %v1164 = vpop.f32.mrb[0].mxu0
        %v1165 = vadd.f32 0.0, %v1164
        %v1166 = vpop.f32.mrb[0].mxu0
        %1167 = vdwg.mxu0
        %v1169 = vsel %vm851, %v815, 0
        %v1172 = vsel %vm851, %v827, 0
        %v1175 = vsel %vm851, %v828, 0
        %1177 = vmatprep.subr.mxu0 0.0
        %1178 = vmatpush1.xpose.msra.mxu0 %v1172
        %1179 = vmatprep.subr.mxu0 0.0
        %1180 = vmatpush1.xpose.msra.mxu0 %v1175
        %1181 = vmatprep.subr.mxu0 0.0
        %1182 = vmatpush1.xpose.msra.mxu0 0.0
        %1183 = vmatprep.subr.mxu0 0.0
        %1184 = vmatpush1.xpose.msra.mxu0 0.0
        %1185 = vmatprep.subr.mxu0 0.0
        %1186 = vmatpush1.xpose.msra.mxu0 0.0
        %1187 = vmatprep.subr.mxu0 0.0
        %1188 = vmatpush1.xpose.msra.mxu0 0.0
        %1189 = vmatprep.subr.mxu0 0.0
        %1190 = vmatpush1.xpose.msra.mxu0 0.0
        %1191 = vmatprep.subr.mxu0 0.0
        %1192 = vmatpush1.xpose.msra.mxu0 0.0
        %1193 = vmatprep.subr.mxu0 0.0
        %1194 = vmatpush1.xpose.msra.mxu0 0.0
        %1195 = vmatprep.subr.mxu0 0.0
        %1196 = vmatpush1.xpose.msra.mxu0 0.0
        %1197 = vmatprep.subr.mxu0 0.0
        %1198 = vmatpush1.xpose.msra.mxu0 0.0
        %1199 = vmatprep.subr.mxu0 0.0
        %1200 = vmatpush1.xpose.msra.mxu0 0.0
        %1201 = vmatprep.subr.mxu0 0.0
        %1202 = vmatpush1.xpose.msra.mxu0 0.0
        %1203 = vmatprep.subr.mxu0 0.0
        %1204 = vmatpush1.xpose.msra.mxu0 0.0
        %1205 = vmatprep.subr.mxu0 0.0
        %1206 = vmatpush1.xpose.msra.mxu0 0.0
        %1207 = vmatprep.subr.mxu0 0.0
        %1208 = vmatpush1.xpose.msra.mxu0 0.0
        %1209 = vmatprep.subr.mxu0 0.0
        %1210 = vmatpush1.xpose.msra.mxu0 0.0
        %1211 = vmatprep.subr.mxu0 0.0
        %1212 = vmatpush1.xpose.msra.mxu0 0.0
        %1213 = vmatprep.subr.mxu0 0.0
        %1214 = vmatpush1.xpose.msra.mxu0 0.0
        %1215 = vmatprep.subr.mxu0 0.0
        %1216 = vmatpush1.xpose.msra.mxu0 0.0
        %1217 = vmatprep.subr.mxu0 0.0
        %1218 = vmatpush1.xpose.msra.mxu0 0.0
        %1219 = vmatprep.subr.mxu0 0.0
        %1220 = vmatpush1.xpose.msra.mxu0 0.0
        %1221 = vmatprep.subr.mxu0 0.0
        %1222 = vmatpush1.xpose.msra.mxu0 0.0
        %1223 = vmatprep.subr.mxu0 0.0
        %1224 = vmatpush1.xpose.msra.mxu0 0.0
        %1225 = vmatprep.subr.mxu0 0.0
        %1226 = vmatpush1.xpose.msra.mxu0 0.0
        %1227 = vmatprep.subr.mxu0 0.0
        %1228 = vmatpush1.xpose.msra.mxu0 0.0
        %1229 = vmatprep.subr.mxu0 0.0
        %1230 = vmatpush1.xpose.msra.mxu0 0.0
        %1231 = vmatprep.subr.mxu0 0.0
        %1232 = vmatpush1.xpose.msra.mxu0 0.0
        %1233 = vmatprep.subr.mxu0 0.0
        %1234 = vmatpush1.xpose.msra.mxu0 0.0
        %1235 = vmatprep.subr.mxu0 0.0
        %1236 = vmatpush1.xpose.msra.mxu0 0.0
        %1237 = vmatprep.subr.mxu0 0.0
        %1238 = vmatpush1.xpose.msra.mxu0 0.0
        %1239 = vmatprep.subr.mxu0 0.0
        %1240 = vmatpush1.xpose.msra.mxu0 0.0
        %1241 = vmatprep.mubr.f32.mxu0 0.0
        %1242 = vmatmul.mubr.f32.gmra.mrb[0].mxu0 %v1169
        %v1243 = vpop.f32.mrb[0].mxu0
        %v1244 = vadd.f32 0.0, %v1243
        %v1245 = vpop.f32.mrb[0].mxu0
        %1246 = vdwg.mxu0
        %v1248 = vsel %vm851, %v816, 0
        %v1251 = vsel %vm851, %v829, 0
        %v1254 = vsel %vm851, %v830, 0
        %1256 = vmatprep.subr.mxu0 0.0
        %1257 = vmatpush1.xpose.msra.mxu0 %v1251
        %1258 = vmatprep.subr.mxu0 0.0
        %1259 = vmatpush1.xpose.msra.mxu0 %v1254
        %1260 = vmatprep.subr.mxu0 0.0
        %1261 = vmatpush1.xpose.msra.mxu0 0.0
        %1262 = vmatprep.subr.mxu0 0.0
        %1263 = vmatpush1.xpose.msra.mxu0 0.0
        %1264 = vmatprep.subr.mxu0 0.0
        %1265 = vmatpush1.xpose.msra.mxu0 0.0
        %1266 = vmatprep.subr.mxu0 0.0
        %1267 = vmatpush1.xpose.msra.mxu0 0.0
        %1268 = vmatprep.subr.mxu0 0.0
        %1269 = vmatpush1.xpose.msra.mxu0 0.0
        %1270 = vmatprep.subr.mxu0 0.0
        %1271 = vmatpush1.xpose.msra.mxu0 0.0
        %1272 = vmatprep.subr.mxu0 0.0
        %1273 = vmatpush1.xpose.msra.mxu0 0.0
        %1274 = vmatprep.subr.mxu0 0.0
        %1275 = vmatpush1.xpose.msra.mxu0 0.0
        %1276 = vmatprep.subr.mxu0 0.0
        %1277 = vmatpush1.xpose.msra.mxu0 0.0
        %1278 = vmatprep.subr.mxu0 0.0
        %1279 = vmatpush1.xpose.msra.mxu0 0.0
        %1280 = vmatprep.subr.mxu0 0.0
        %1281 = vmatpush1.xpose.msra.mxu0 0.0
        %1282 = vmatprep.subr.mxu0 0.0
        %1283 = vmatpush1.xpose.msra.mxu0 0.0
        %1284 = vmatprep.subr.mxu0 0.0
        %1285 = vmatpush1.xpose.msra.mxu0 0.0
        %1286 = vmatprep.subr.mxu0 0.0
        %1287 = vmatpush1.xpose.msra.mxu0 0.0
        %1288 = vmatprep.subr.mxu0 0.0
        %1289 = vmatpush1.xpose.msra.mxu0 0.0
        %1290 = vmatprep.subr.mxu0 0.0
        %1291 = vmatpush1.xpose.msra.mxu0 0.0
        %1292 = vmatprep.subr.mxu0 0.0
        %1293 = vmatpush1.xpose.msra.mxu0 0.0
        %1294 = vmatprep.subr.mxu0 0.0
        %1295 = vmatpush1.xpose.msra.mxu0 0.0
        %1296 = vmatprep.subr.mxu0 0.0
        %1297 = vmatpush1.xpose.msra.mxu0 0.0
        %1298 = vmatprep.subr.mxu0 0.0
        %1299 = vmatpush1.xpose.msra.mxu0 0.0
        %1300 = vmatprep.subr.mxu0 0.0
        %1301 = vmatpush1.xpose.msra.mxu0 0.0
        %1302 = vmatprep.subr.mxu0 0.0
        %1303 = vmatpush1.xpose.msra.mxu0 0.0
        %1304 = vmatprep.subr.mxu0 0.0
        %1305 = vmatpush1.xpose.msra.mxu0 0.0
        %1306 = vmatprep.subr.mxu0 0.0
        %1307 = vmatpush1.xpose.msra.mxu0 0.0
        %1308 = vmatprep.subr.mxu0 0.0
        %1309 = vmatpush1.xpose.msra.mxu0 0.0
        %1310 = vmatprep.subr.mxu0 0.0
        %1311 = vmatpush1.xpose.msra.mxu0 0.0
        %1312 = vmatprep.subr.mxu0 0.0
        %1313 = vmatpush1.xpose.msra.mxu0 0.0
        %1314 = vmatprep.subr.mxu0 0.0
        %1315 = vmatpush1.xpose.msra.mxu0 0.0
        %1316 = vmatprep.subr.mxu0 0.0
        %1317 = vmatpush1.xpose.msra.mxu0 0.0
        %1318 = vmatprep.subr.mxu0 0.0
        %1319 = vmatpush1.xpose.msra.mxu0 0.0
        %1320 = vmatprep.mubr.f32.mxu0 0.0
        %1321 = vmatmul.mubr.f32.gmra.mrb[0].mxu0 %v1248
        %v1322 = vpop.f32.mrb[0].mxu0
        %v1323 = vadd.f32 0.0, %v1322
        %v1324 = vpop.f32.mrb[0].mxu0
        %1325 = vdwg.mxu0
        %v1327 = vsel %vm851, %v817, 0
        %v1330 = vsel %vm851, %v831, 0
        %v1333 = vsel %vm851, %v832, 0
        %1335 = vmatprep.subr.mxu0 0.0
        %1336 = vmatpush1.xpose.msra.mxu0 %v1330
        %1337 = vmatprep.subr.mxu0 0.0
        %1338 = vmatpush1.xpose.msra.mxu0 %v1333
        %1339 = vmatprep.subr.mxu0 0.0
        %1340 = vmatpush1.xpose.msra.mxu0 0.0
        %1341 = vmatprep.subr.mxu0 0.0
        %1342 = vmatpush1.xpose.msra.mxu0 0.0
        %1343 = vmatprep.subr.mxu0 0.0
        %1344 = vmatpush1.xpose.msra.mxu0 0.0
        %1345 = vmatprep.subr.mxu0 0.0
        %1346 = vmatpush1.xpose.msra.mxu0 0.0
        %1347 = vmatprep.subr.mxu0 0.0
        %1348 = vmatpush1.xpose.msra.mxu0 0.0
        %1349 = vmatprep.subr.mxu0 0.0
        %1350 = vmatpush1.xpose.msra.mxu0 0.0
        %1351 = vmatprep.subr.mxu0 0.0
        %1352 = vmatpush1.xpose.msra.mxu0 0.0
        %1353 = vmatprep.subr.mxu0 0.0
        %1354 = vmatpush1.xpose.msra.mxu0 0.0
        %1355 = vmatprep.subr.mxu0 0.0
        %1356 = vmatpush1.xpose.msra.mxu0 0.0
        %1357 = vmatprep.subr.mxu0 0.0
        %1358 = vmatpush1.xpose.msra.mxu0 0.0
        %1359 = vmatprep.subr.mxu0 0.0
        %1360 = vmatpush1.xpose.msra.mxu0 0.0
        %1361 = vmatprep.subr.mxu0 0.0
        %1362 = vmatpush1.xpose.msra.mxu0 0.0
        %1363 = vmatprep.subr.mxu0 0.0
        %1364 = vmatpush1.xpose.msra.mxu0 0.0
        %1365 = vmatprep.subr.mxu0 0.0
        %1366 = vmatpush1.xpose.msra.mxu0 0.0
        %1367 = vmatprep.subr.mxu0 0.0
        %1368 = vmatpush1.xpose.msra.mxu0 0.0
        %1369 = vmatprep.subr.mxu0 0.0
        %1370 = vmatpush1.xpose.msra.mxu0 0.0
        %1371 = vmatprep.subr.mxu0 0.0
        %1372 = vmatpush1.xpose.msra.mxu0 0.0
        %1373 = vmatprep.subr.mxu0 0.0
        %1374 = vmatpush1.xpose.msra.mxu0 0.0
        %1375 = vmatprep.subr.mxu0 0.0
        %1376 = vmatpush1.xpose.msra.mxu0 0.0
        %1377 = vmatprep.subr.mxu0 0.0
        %1378 = vmatpush1.xpose.msra.mxu0 0.0
        %1379 = vmatprep.subr.mxu0 0.0
        %1380 = vmatpush1.xpose.msra.mxu0 0.0
        %1381 = vmatprep.subr.mxu0 0.0
        %1382 = vmatpush1.xpose.msra.mxu0 0.0
        %1383 = vmatprep.subr.mxu0 0.0
        %1384 = vmatpush1.xpose.msra.mxu0 0.0
        %1385 = vmatprep.subr.mxu0 0.0
        %1386 = vmatpush1.xpose.msra.mxu0 0.0
        %1387 = vmatprep.subr.mxu0 0.0
        %1388 = vmatpush1.xpose.msra.mxu0 0.0
        %1389 = vmatprep.subr.mxu0 0.0
        %1390 = vmatpush1.xpose.msra.mxu0 0.0
        %1391 = vmatprep.subr.mxu0 0.0
        %1392 = vmatpush1.xpose.msra.mxu0 0.0
        %1393 = vmatprep.subr.mxu0 0.0
        %1394 = vmatpush1.xpose.msra.mxu0 0.0
        %1395 = vmatprep.subr.mxu0 0.0
        %1396 = vmatpush1.xpose.msra.mxu0 0.0
        %1397 = vmatprep.subr.mxu0 0.0
        %1398 = vmatpush1.xpose.msra.mxu0 0.0
        %1399 = vmatprep.mubr.f32.mxu0 0.0
        %1400 = vmatmul.mubr.f32.gmra.mrb[0].mxu0 %v1327
        %v1401 = vpop.f32.mrb[0].mxu0
        %v1402 = vadd.f32 0.0, %v1401
        %v1403 = vpop.f32.mrb[0].mxu0
        %1404 = vdwg.mxu0
        %v1406 = vsel %vm851, %v818, 0
        %v1409 = vsel %vm851, %v833, 0
        %v1412 = vsel %vm851, %v834, 0
        %1414 = vmatprep.subr.mxu0 0.0
        %1415 = vmatpush1.xpose.msra.mxu0 %v1409
        %1416 = vmatprep.subr.mxu0 0.0
        %1417 = vmatpush1.xpose.msra.mxu0 %v1412
        %1418 = vmatprep.subr.mxu0 0.0
        %1419 = vmatpush1.xpose.msra.mxu0 0.0
        %1420 = vmatprep.subr.mxu0 0.0
        %1421 = vmatpush1.xpose.msra.mxu0 0.0
        %1422 = vmatprep.subr.mxu0 0.0
        %1423 = vmatpush1.xpose.msra.mxu0 0.0
        %1424 = vmatprep.subr.mxu0 0.0
        %1425 = vmatpush1.xpose.msra.mxu0 0.0
        %1426 = vmatprep.subr.mxu0 0.0
        %1427 = vmatpush1.xpose.msra.mxu0 0.0
        %1428 = vmatprep.subr.mxu0 0.0
        %1429 = vmatpush1.xpose.msra.mxu0 0.0
        %1430 = vmatprep.subr.mxu0 0.0
        %1431 = vmatpush1.xpose.msra.mxu0 0.0
        %1432 = vmatprep.subr.mxu0 0.0
        %1433 = vmatpush1.xpose.msra.mxu0 0.0
        %1434 = vmatprep.subr.mxu0 0.0
        %1435 = vmatpush1.xpose.msra.mxu0 0.0
        %1436 = vmatprep.subr.mxu0 0.0
        %1437 = vmatpush1.xpose.msra.mxu0 0.0
        %1438 = vmatprep.subr.mxu0 0.0
        %1439 = vmatpush1.xpose.msra.mxu0 0.0
        %1440 = vmatprep.subr.mxu0 0.0
        %1441 = vmatpush1.xpose.msra.mxu0 0.0
        %1442 = vmatprep.subr.mxu0 0.0
        %1443 = vmatpush1.xpose.msra.mxu0 0.0
        %1444 = vmatprep.subr.mxu0 0.0
        %1445 = vmatpush1.xpose.msra.mxu0 0.0
        %1446 = vmatprep.subr.mxu0 0.0
        %1447 = vmatpush1.xpose.msra.mxu0 0.0
        %1448 = vmatprep.subr.mxu0 0.0
        %1449 = vmatpush1.xpose.msra.mxu0 0.0
        %1450 = vmatprep.subr.mxu0 0.0
        %1451 = vmatpush1.xpose.msra.mxu0 0.0
        %1452 = vmatprep.subr.mxu0 0.0
        %1453 = vmatpush1.xpose.msra.mxu0 0.0
        %1454 = vmatprep.subr.mxu0 0.0
        %1455 = vmatpush1.xpose.msra.mxu0 0.0
        %1456 = vmatprep.subr.mxu0 0.0
        %1457 = vmatpush1.xpose.msra.mxu0 0.0
        %1458 = vmatprep.subr.mxu0 0.0
        %1459 = vmatpush1.xpose.msra.mxu0 0.0
        %1460 = vmatprep.subr.mxu0 0.0
        %1461 = vmatpush1.xpose.msra.mxu0 0.0
        %1462 = vmatprep.subr.mxu0 0.0
        %1463 = vmatpush1.xpose.msra.mxu0 0.0
        %1464 = vmatprep.subr.mxu0 0.0
        %1465 = vmatpush1.xpose.msra.mxu0 0.0
        %1466 = vmatprep.subr.mxu0 0.0
        %1467 = vmatpush1.xpose.msra.mxu0 0.0
        %1468 = vmatprep.subr.mxu0 0.0
        %1469 = vmatpush1.xpose.msra.mxu0 0.0
        %1470 = vmatprep.subr.mxu0 0.0
        %1471 = vmatpush1.xpose.msra.mxu0 0.0
        %1472 = vmatprep.subr.mxu0 0.0
        %1473 = vmatpush1.xpose.msra.mxu0 0.0
        %1474 = vmatprep.subr.mxu0 0.0
        %1475 = vmatpush1.xpose.msra.mxu0 0.0
        %1476 = vmatprep.subr.mxu0 0.0
        %1477 = vmatpush1.xpose.msra.mxu0 0.0
        %1478 = vmatprep.mubr.f32.mxu0 0.0
        %1479 = vmatmul.mubr.f32.gmra.mrb[0].mxu0 %v1406
        %v1480 = vpop.f32.mrb[0].mxu0
        %v1481 = vadd.f32 0.0, %v1480
        %v1482 = vpop.f32.mrb[0].mxu0
        %1483 = vdwg.mxu0
        %v1484 = vsel %vm851, %v928, -inf
        %1485 = vmax.xlane.f32.xlu0 %v1484
        %v1486 = vpop.xlane.xlu0 %1485
        %v1487 = vsel %vm851, %v1007, -inf
        %1488 = vmax.xlane.f32.xlu0 %v1487
        %v1489 = vpop.xlane.xlu0 %1488
        %v1490 = vsel %vm851, %v1086, -inf
        %1491 = vmax.xlane.f32.xlu0 %v1490
        %v1492 = vpop.xlane.xlu0 %1491
        %v1493 = vsel %vm851, %v1165, -inf
        %1494 = vmax.xlane.f32.xlu0 %v1493
        %v1495 = vpop.xlane.xlu0 %1494
        %v1496 = vsel %vm851, %v1244, -inf
        %1497 = vmax.xlane.f32.xlu0 %v1496
        %v1498 = vpop.xlane.xlu0 %1497
        %v1499 = vsel %vm851, %v1323, -inf
        %1500 = vmax.xlane.f32.xlu0 %v1499
        %v1501 = vpop.xlane.xlu0 %1500
        %v1502 = vsel %vm851, %v1402, -inf
        %1503 = vmax.xlane.f32.xlu0 %v1502
        %v1504 = vpop.xlane.xlu0 %1503
        %v1505 = vsel %vm851, %v1481, -inf
        %1506 = vmax.xlane.f32.xlu0 %v1505
        %v1507 = vpop.xlane.xlu0 %1506
        %v1508 = vsub.f32 %v928, %v1486
        %v1509 = vsub.f32 %v1007, %v1489
        %v1510 = vsub.f32 %v1086, %v1492
        %v1511 = vsub.f32 %v1165, %v1495
        %v1512 = vsub.f32 %v1244, %v1498
        %v1513 = vsub.f32 %v1323, %v1501
        %v1514 = vsub.f32 %v1402, %v1504
        %v1515 = vsub.f32 %v1481, %v1507
        %v1516 = vmul.f32 %v1508, 1.442695
        %v1517 = vpow.pop %v1516
        %v1518 = vmul.f32 %v1509, 1.442695
        %v1519 = vpow.pop %v1518
        %v1520 = vmul.f32 %v1510, 1.442695
        %v1521 = vpow.pop %v1520
        %v1522 = vmul.f32 %v1511, 1.442695
        %v1523 = vpow.pop %v1522
        %v1524 = vmul.f32 %v1512, 1.442695
        %v1525 = vpow.pop %v1524
        %v1526 = vmul.f32 %v1513, 1.442695
        %v1527 = vpow.pop %v1526
        %v1528 = vmul.f32 %v1514, 1.442695
        %v1529 = vpow.pop %v1528
        %v1530 = vmul.f32 %v1515, 1.442695
        %v1531 = vpow.pop %v1530
        %v1532 = vsel %vm851, %v1517, 0.0
        %1533 = vadd.xlane.f32.xlu0 %v1532
        %v1534 = vpop.xlane.xlu0 %1533
        %v1535 = vsel %vm851, %v1519, 0.0
        %1536 = vadd.xlane.f32.xlu0 %v1535
        %v1537 = vpop.xlane.xlu0 %1536
        %v1538 = vsel %vm851, %v1521, 0.0
        %1539 = vadd.xlane.f32.xlu0 %v1538
        %v1540 = vpop.xlane.xlu0 %1539
        %v1541 = vsel %vm851, %v1523, 0.0
        %1542 = vadd.xlane.f32.xlu0 %v1541
        %v1543 = vpop.xlane.xlu0 %1542
        %v1544 = vsel %vm851, %v1525, 0.0
        %1545 = vadd.xlane.f32.xlu0 %v1544
        %v1546 = vpop.xlane.xlu0 %1545
        %v1547 = vsel %vm851, %v1527, 0.0
        %1548 = vadd.xlane.f32.xlu0 %v1547
        %v1549 = vpop.xlane.xlu0 %1548
        %v1550 = vsel %vm851, %v1529, 0.0
        %1551 = vadd.xlane.f32.xlu0 %v1550
        %v1552 = vpop.xlane.xlu0 %1551
        %v1553 = vsel %vm851, %v1531, 0.0
        %1554 = vadd.xlane.f32.xlu0 %v1553
        %v1555 = vpop.xlane.xlu0 %1554
        %v1556 = vrcp.pop %v1534
        %v1557 = vrcp.pop %v1537
        %v1558 = vrcp.pop %v1540
        %v1559 = vrcp.pop %v1543
        %v1560 = vrcp.pop %v1546
        %v1561 = vrcp.pop %v1549
        %v1562 = vrcp.pop %v1552
        %v1563 = vrcp.pop %v1555
        %v1564 = vmul.f32 %v1517, %v1556
        %v1565 = vmul.f32 %v1519, %v1557
        %v1566 = vmul.f32 %v1521, %v1558
        %v1567 = vmul.f32 %v1523, %v1559
        %v1568 = vmul.f32 %v1525, %v1560
        %v1569 = vmul.f32 %v1527, %v1561
        %v1570 = vmul.f32 %v1529, %v1562
        %v1571 = vmul.f32 %v1531, %v1563
        %v1573 = vsel %vm851, %v1564, 0
        %1575 = vmatprep.subr.mxu0 0.0
        %1576 = vmatpush1.msra.mxu0 %v835
        %1577 = vmatprep.subr.mxu0 0.0
        %1578 = vmatpush1.msra.mxu0 %v836
        %1579 = vmatprep.subr.mxu0 0.0
        %1580 = vmatpush1.msra.mxu0 0.0
        %1581 = vmatprep.subr.mxu0 0.0
        %1582 = vmatpush1.msra.mxu0 0.0
        %1583 = vmatprep.subr.mxu0 0.0
        %1584 = vmatpush1.msra.mxu0 0.0
        %1585 = vmatprep.subr.mxu0 0.0
        %1586 = vmatpush1.msra.mxu0 0.0
        %1587 = vmatprep.subr.mxu0 0.0
        %1588 = vmatpush1.msra.mxu0 0.0
        %1589 = vmatprep.subr.mxu0 0.0
        %1590 = vmatpush1.msra.mxu0 0.0
        %1591 = vmatprep.subr.mxu0 0.0
        %1592 = vmatpush1.msra.mxu0 0.0
        %1593 = vmatprep.subr.mxu0 0.0
        %1594 = vmatpush1.msra.mxu0 0.0
        %1595 = vmatprep.subr.mxu0 0.0
        %1596 = vmatpush1.msra.mxu0 0.0
        %1597 = vmatprep.subr.mxu0 0.0
        %1598 = vmatpush1.msra.mxu0 0.0
        %1599 = vmatprep.subr.mxu0 0.0
        %1600 = vmatpush1.msra.mxu0 0.0
        %1601 = vmatprep.subr.mxu0 0.0
        %1602 = vmatpush1.msra.mxu0 0.0
        %1603 = vmatprep.subr.mxu0 0.0
        %1604 = vmatpush1.msra.mxu0 0.0
        %1605 = vmatprep.subr.mxu0 0.0
        %1606 = vmatpush1.msra.mxu0 0.0
        %1607 = vmatprep.subr.mxu0 0.0
        %1608 = vmatpush1.msra.mxu0 0.0
        %1609 = vmatprep.subr.mxu0 0.0
        %1610 = vmatpush1.msra.mxu0 0.0
        %1611 = vmatprep.subr.mxu0 0.0
        %1612 = vmatpush1.msra.mxu0 0.0
        %1613 = vmatprep.subr.mxu0 0.0
        %1614 = vmatpush1.msra.mxu0 0.0
        %1615 = vmatprep.subr.mxu0 0.0
        %1616 = vmatpush1.msra.mxu0 0.0
        %1617 = vmatprep.subr.mxu0 0.0
        %1618 = vmatpush1.msra.mxu0 0.0
        %1619 = vmatprep.subr.mxu0 0.0
        %1620 = vmatpush1.msra.mxu0 0.0
        %1621 = vmatprep.subr.mxu0 0.0
        %1622 = vmatpush1.msra.mxu0 0.0
        %1623 = vmatprep.subr.mxu0 0.0
        %1624 = vmatpush1.msra.mxu0 0.0
        %1625 = vmatprep.subr.mxu0 0.0
        %1626 = vmatpush1.msra.mxu0 0.0
        %1627 = vmatprep.subr.mxu0 0.0
        %1628 = vmatpush1.msra.mxu0 0.0
        %1629 = vmatprep.subr.mxu0 0.0
        %1630 = vmatpush1.msra.mxu0 0.0
        %1631 = vmatprep.subr.mxu0 0.0
        %1632 = vmatpush1.msra.mxu0 0.0
        %1633 = vmatprep.subr.mxu0 0.0
        %1634 = vmatpush1.msra.mxu0 0.0
        %1635 = vmatprep.subr.mxu0 0.0
        %1636 = vmatpush1.msra.mxu0 0.0
        %1637 = vmatprep.subr.mxu0 0.0
        %1638 = vmatpush1.msra.mxu0 0.0
        %1639 = vmatprep.mubr.f32.mxu0 0.0
        %1640 = vmatmul.mubr.f32.gmra.mrb[0].mxu0 %v1573
        %v1641 = vpop.f32.mrb[0].mxu0
        %v1642 = vadd.f32 0.0, %v1641
        %v1643 = vpop.f32.mrb[0].mxu0
        %1644 = vdwg.mxu0
        %v1646 = vsel %vm851, %v1565, 0
        %1648 = vmatprep.subr.mxu0 0.0
        %1649 = vmatpush1.msra.mxu0 %v837
        %1650 = vmatprep.subr.mxu0 0.0
        %1651 = vmatpush1.msra.mxu0 %v838
        %1652 = vmatprep.subr.mxu0 0.0
        %1653 = vmatpush1.msra.mxu0 0.0
        %1654 = vmatprep.subr.mxu0 0.0
        %1655 = vmatpush1.msra.mxu0 0.0
        %1656 = vmatprep.subr.mxu0 0.0
        %1657 = vmatpush1.msra.mxu0 0.0
        %1658 = vmatprep.subr.mxu0 0.0
        %1659 = vmatpush1.msra.mxu0 0.0
        %1660 = vmatprep.subr.mxu0 0.0
        %1661 = vmatpush1.msra.mxu0 0.0
        %1662 = vmatprep.subr.mxu0 0.0
        %1663 = vmatpush1.msra.mxu0 0.0
        %1664 = vmatprep.subr.mxu0 0.0
        %1665 = vmatpush1.msra.mxu0 0.0
        %1666 = vmatprep.subr.mxu0 0.0
        %1667 = vmatpush1.msra.mxu0 0.0
        %1668 = vmatprep.subr.mxu0 0.0
        %1669 = vmatpush1.msra.mxu0 0.0
        %1670 = vmatprep.subr.mxu0 0.0
        %1671 = vmatpush1.msra.mxu0 0.0
        %1672 = vmatprep.subr.mxu0 0.0
        %1673 = vmatpush1.msra.mxu0 0.0
        %1674 = vmatprep.subr.mxu0 0.0
        %1675 = vmatpush1.msra.mxu0 0.0
        %1676 = vmatprep.subr.mxu0 0.0
        %1677 = vmatpush1.msra.mxu0 0.0
        %1678 = vmatprep.subr.mxu0 0.0
        %1679 = vmatpush1.msra.mxu0 0.0
        %1680 = vmatprep.subr.mxu0 0.0
        %1681 = vmatpush1.msra.mxu0 0.0
        %1682 = vmatprep.subr.mxu0 0.0
        %1683 = vmatpush1.msra.mxu0 0.0
        %1684 = vmatprep.subr.mxu0 0.0
        %1685 = vmatpush1.msra.mxu0 0.0
        %1686 = vmatprep.subr.mxu0 0.0
        %1687 = vmatpush1.msra.mxu0 0.0
        %1688 = vmatprep.subr.mxu0 0.0
        %1689 = vmatpush1.msra.mxu0 0.0
        %1690 = vmatprep.subr.mxu0 0.0
        %1691 = vmatpush1.msra.mxu0 0.0
        %1692 = vmatprep.subr.mxu0 0.0
        %1693 = vmatpush1.msra.mxu0 0.0
        %1694 = vmatprep.subr.mxu0 0.0
        %1695 = vmatpush1.msra.mxu0 0.0
        %1696 = vmatprep.subr.mxu0 0.0
        %1697 = vmatpush1.msra.mxu0 0.0
        %1698 = vmatprep.subr.mxu0 0.0
        %1699 = vmatpush1.msra.mxu0 0.0
        %1700 = vmatprep.subr.mxu0 0.0
        %1701 = vmatpush1.msra.mxu0 0.0
        %1702 = vmatprep.subr.mxu0 0.0
        %1703 = vmatpush1.msra.mxu0 0.0
        %1704 = vmatprep.subr.mxu0 0.0
        %1705 = vmatpush1.msra.mxu0 0.0
        %1706 = vmatprep.subr.mxu0 0.0
        %1707 = vmatpush1.msra.mxu0 0.0
        %1708 = vmatprep.subr.mxu0 0.0
        %1709 = vmatpush1.msra.mxu0 0.0
        %1710 = vmatprep.subr.mxu0 0.0
        %1711 = vmatpush1.msra.mxu0 0.0
        %1712 = vmatprep.mubr.f32.mxu0 0.0
        %1713 = vmatmul.mubr.f32.gmra.mrb[0].mxu0 %v1646
        %v1714 = vpop.f32.mrb[0].mxu0
        %v1715 = vadd.f32 0.0, %v1714
        %v1716 = vpop.f32.mrb[0].mxu0
        %1717 = vdwg.mxu0
        %v1719 = vsel %vm851, %v1566, 0
        %1721 = vmatprep.subr.mxu0 0.0
        %1722 = vmatpush1.msra.mxu0 %v839
        %1723 = vmatprep.subr.mxu0 0.0
        %1724 = vmatpush1.msra.mxu0 %v840
        %1725 = vmatprep.subr.mxu0 0.0
        %1726 = vmatpush1.msra.mxu0 0.0
        %1727 = vmatprep.subr.mxu0 0.0
        %1728 = vmatpush1.msra.mxu0 0.0
        %1729 = vmatprep.subr.mxu0 0.0
        %1730 = vmatpush1.msra.mxu0 0.0
        %1731 = vmatprep.subr.mxu0 0.0
        %1732 = vmatpush1.msra.mxu0 0.0
        %1733 = vmatprep.subr.mxu0 0.0
        %1734 = vmatpush1.msra.mxu0 0.0
        %1735 = vmatprep.subr.mxu0 0.0
        %1736 = vmatpush1.msra.mxu0 0.0
        %1737 = vmatprep.subr.mxu0 0.0
        %1738 = vmatpush1.msra.mxu0 0.0
        %1739 = vmatprep.subr.mxu0 0.0
        %1740 = vmatpush1.msra.mxu0 0.0
        %1741 = vmatprep.subr.mxu0 0.0
        %1742 = vmatpush1.msra.mxu0 0.0
        %1743 = vmatprep.subr.mxu0 0.0
        %1744 = vmatpush1.msra.mxu0 0.0
        %1745 = vmatprep.subr.mxu0 0.0
        %1746 = vmatpush1.msra.mxu0 0.0
        %1747 = vmatprep.subr.mxu0 0.0
        %1748 = vmatpush1.msra.mxu0 0.0
        %1749 = vmatprep.subr.mxu0 0.0
        %1750 = vmatpush1.msra.mxu0 0.0
        %1751 = vmatprep.subr.mxu0 0.0
        %1752 = vmatpush1.msra.mxu0 0.0
        %1753 = vmatprep.subr.mxu0 0.0
        %1754 = vmatpush1.msra.mxu0 0.0
        %1755 = vmatprep.subr.mxu0 0.0
        %1756 = vmatpush1.msra.mxu0 0.0
        %1757 = vmatprep.subr.mxu0 0.0
        %1758 = vmatpush1.msra.mxu0 0.0
        %1759 = vmatprep.subr.mxu0 0.0
        %1760 = vmatpush1.msra.mxu0 0.0
        %1761 = vmatprep.subr.mxu0 0.0
        %1762 = vmatpush1.msra.mxu0 0.0
        %1763 = vmatprep.subr.mxu0 0.0
        %1764 = vmatpush1.msra.mxu0 0.0
        %1765 = vmatprep.subr.mxu0 0.0
        %1766 = vmatpush1.msra.mxu0 0.0
        %1767 = vmatprep.subr.mxu0 0.0
        %1768 = vmatpush1.msra.mxu0 0.0
        %1769 = vmatprep.subr.mxu0 0.0
        %1770 = vmatpush1.msra.mxu0 0.0
        %1771 = vmatprep.subr.mxu0 0.0
        %1772 = vmatpush1.msra.mxu0 0.0
        %1773 = vmatprep.subr.mxu0 0.0
        %1774 = vmatpush1.msra.mxu0 0.0
        %1775 = vmatprep.subr.mxu0 0.0
        %1776 = vmatpush1.msra.mxu0 0.0
        %1777 = vmatprep.subr.mxu0 0.0
        %1778 = vmatpush1.msra.mxu0 0.0
        %1779 = vmatprep.subr.mxu0 0.0
        %1780 = vmatpush1.msra.mxu0 0.0
        %1781 = vmatprep.subr.mxu0 0.0
        %1782 = vmatpush1.msra.mxu0 0.0
        %1783 = vmatprep.subr.mxu0 0.0
        %1784 = vmatpush1.msra.mxu0 0.0
        %1785 = vmatprep.mubr.f32.mxu0 0.0
        %1786 = vmatmul.mubr.f32.gmra.mrb[0].mxu0 %v1719
        %v1787 = vpop.f32.mrb[0].mxu0
        %v1788 = vadd.f32 0.0, %v1787
        %v1789 = vpop.f32.mrb[0].mxu0
        %1790 = vdwg.mxu0
        %v1792 = vsel %vm851, %v1567, 0
        %1794 = vmatprep.subr.mxu0 0.0
        %1795 = vmatpush1.msra.mxu0 %v841
        %1796 = vmatprep.subr.mxu0 0.0
        %1797 = vmatpush1.msra.mxu0 %v842
        %1798 = vmatprep.subr.mxu0 0.0
        %1799 = vmatpush1.msra.mxu0 0.0
        %1800 = vmatprep.subr.mxu0 0.0
        %1801 = vmatpush1.msra.mxu0 0.0
        %1802 = vmatprep.subr.mxu0 0.0
        %1803 = vmatpush1.msra.mxu0 0.0
        %1804 = vmatprep.subr.mxu0 0.0
        %1805 = vmatpush1.msra.mxu0 0.0
        %1806 = vmatprep.subr.mxu0 0.0
        %1807 = vmatpush1.msra.mxu0 0.0
        %1808 = vmatprep.subr.mxu0 0.0
        %1809 = vmatpush1.msra.mxu0 0.0
        %1810 = vmatprep.subr.mxu0 0.0
        %1811 = vmatpush1.msra.mxu0 0.0
        %1812 = vmatprep.subr.mxu0 0.0
        %1813 = vmatpush1.msra.mxu0 0.0
        %1814 = vmatprep.subr.mxu0 0.0
        %1815 = vmatpush1.msra.mxu0 0.0
        %1816 = vmatprep.subr.mxu0 0.0
        %1817 = vmatpush1.msra.mxu0 0.0
        %1818 = vmatprep.subr.mxu0 0.0
        %1819 = vmatpush1.msra.mxu0 0.0
        %1820 = vmatprep.subr.mxu0 0.0
        %1821 = vmatpush1.msra.mxu0 0.0
        %1822 = vmatprep.subr.mxu0 0.0
        %1823 = vmatpush1.msra.mxu0 0.0
        %1824 = vmatprep.subr.mxu0 0.0
        %1825 = vmatpush1.msra.mxu0 0.0
        %1826 = vmatprep.subr.mxu0 0.0
        %1827 = vmatpush1.msra.mxu0 0.0
        %1828 = vmatprep.subr.mxu0 0.0
        %1829 = vmatpush1.msra.mxu0 0.0
        %1830 = vmatprep.subr.mxu0 0.0
        %1831 = vmatpush1.msra.mxu0 0.0
        %1832 = vmatprep.subr.mxu0 0.0
        %1833 = vmatpush1.msra.mxu0 0.0
        %1834 = vmatprep.subr.mxu0 0.0
        %1835 = vmatpush1.msra.mxu0 0.0
        %1836 = vmatprep.subr.mxu0 0.0
        %1837 = vmatpush1.msra.mxu0 0.0
        %1838 = vmatprep.subr.mxu0 0.0
        %1839 = vmatpush1.msra.mxu0 0.0
        %1840 = vmatprep.subr.mxu0 0.0
        %1841 = vmatpush1.msra.mxu0 0.0
        %1842 = vmatprep.subr.mxu0 0.0
        %1843 = vmatpush1.msra.mxu0 0.0
        %1844 = vmatprep.subr.mxu0 0.0
        %1845 = vmatpush1.msra.mxu0 0.0
        %1846 = vmatprep.subr.mxu0 0.0
        %1847 = vmatpush1.msra.mxu0 0.0
        %1848 = vmatprep.subr.mxu0 0.0
        %1849 = vmatpush1.msra.mxu0 0.0
        %1850 = vmatprep.subr.mxu0 0.0
        %1851 = vmatpush1.msra.mxu0 0.0
        %1852 = vmatprep.subr.mxu0 0.0
        %1853 = vmatpush1.msra.mxu0 0.0
        %1854 = vmatprep.subr.mxu0 0.0
        %1855 = vmatpush1.msra.mxu0 0.0
        %1856 = vmatprep.subr.mxu0 0.0
        %1857 = vmatpush1.msra.mxu0 0.0
        %1858 = vmatprep.mubr.f32.mxu0 0.0
        %1859 = vmatmul.mubr.f32.gmra.mrb[0].mxu0 %v1792
        %v1860 = vpop.f32.mrb[0].mxu0
        %v1861 = vadd.f32 0.0, %v1860
        %v1862 = vpop.f32.mrb[0].mxu0
        %1863 = vdwg.mxu0
        %v1865 = vsel %vm851, %v1568, 0
        %1867 = vmatprep.subr.mxu0 0.0
        %1868 = vmatpush1.msra.mxu0 %v843
        %1869 = vmatprep.subr.mxu0 0.0
        %1870 = vmatpush1.msra.mxu0 %v844
        %1871 = vmatprep.subr.mxu0 0.0
        %1872 = vmatpush1.msra.mxu0 0.0
        %1873 = vmatprep.subr.mxu0 0.0
        %1874 = vmatpush1.msra.mxu0 0.0
        %1875 = vmatprep.subr.mxu0 0.0
        %1876 = vmatpush1.msra.mxu0 0.0
        %1877 = vmatprep.subr.mxu0 0.0
        %1878 = vmatpush1.msra.mxu0 0.0
        %1879 = vmatprep.subr.mxu0 0.0
        %1880 = vmatpush1.msra.mxu0 0.0
        %1881 = vmatprep.subr.mxu0 0.0
        %1882 = vmatpush1.msra.mxu0 0.0
        %1883 = vmatprep.subr.mxu0 0.0
        %1884 = vmatpush1.msra.mxu0 0.0
        %1885 = vmatprep.subr.mxu0 0.0
        %1886 = vmatpush1.msra.mxu0 0.0
        %1887 = vmatprep.subr.mxu0 0.0
        %1888 = vmatpush1.msra.mxu0 0.0
        %1889 = vmatprep.subr.mxu0 0.0
        %1890 = vmatpush1.msra.mxu0 0.0
        %1891 = vmatprep.subr.mxu0 0.0
        %1892 = vmatpush1.msra.mxu0 0.0
        %1893 = vmatprep.subr.mxu0 0.0
        %1894 = vmatpush1.msra.mxu0 0.0
        %1895 = vmatprep.subr.mxu0 0.0
        %1896 = vmatpush1.msra.mxu0 0.0
        %1897 = vmatprep.subr.mxu0 0.0
        %1898 = vmatpush1.msra.mxu0 0.0
        %1899 = vmatprep.subr.mxu0 0.0
        %1900 = vmatpush1.msra.mxu0 0.0
        %1901 = vmatprep.subr.mxu0 0.0
        %1902 = vmatpush1.msra.mxu0 0.0
        %1903 = vmatprep.subr.mxu0 0.0
        %1904 = vmatpush1.msra.mxu0 0.0
        %1905 = vmatprep.subr.mxu0 0.0
        %1906 = vmatpush1.msra.mxu0 0.0
        %1907 = vmatprep.subr.mxu0 0.0
        %1908 = vmatpush1.msra.mxu0 0.0
        %1909 = vmatprep.subr.mxu0 0.0
        %1910 = vmatpush1.msra.mxu0 0.0
        %1911 = vmatprep.subr.mxu0 0.0
        %1912 = vmatpush1.msra.mxu0 0.0
        %1913 = vmatprep.subr.mxu0 0.0
        %1914 = vmatpush1.msra.mxu0 0.0
        %1915 = vmatprep.subr.mxu0 0.0
        %1916 = vmatpush1.msra.mxu0 0.0
        %1917 = vmatprep.subr.mxu0 0.0
        %1918 = vmatpush1.msra.mxu0 0.0
        %1919 = vmatprep.subr.mxu0 0.0
        %1920 = vmatpush1.msra.mxu0 0.0
        %1921 = vmatprep.subr.mxu0 0.0
        %1922 = vmatpush1.msra.mxu0 0.0
        %1923 = vmatprep.subr.mxu0 0.0
        %1924 = vmatpush1.msra.mxu0 0.0
        %1925 = vmatprep.subr.mxu0 0.0
        %1926 = vmatpush1.msra.mxu0 0.0
        %1927 = vmatprep.subr.mxu0 0.0
        %1928 = vmatpush1.msra.mxu0 0.0
        %1929 = vmatprep.subr.mxu0 0.0
        %1930 = vmatpush1.msra.mxu0 0.0
        %1931 = vmatprep.mubr.f32.mxu0 0.0
        %1932 = vmatmul.mubr.f32.gmra.mrb[0].mxu0 %v1865
        %v1933 = vpop.f32.mrb[0].mxu0
        %v1934 = vadd.f32 0.0, %v1933
        %v1935 = vpop.f32.mrb[0].mxu0
        %1936 = vdwg.mxu0
        %v1938 = vsel %vm851, %v1569, 0
        %1940 = vmatprep.subr.mxu0 0.0
        %1941 = vmatpush1.msra.mxu0 %v845
        %1942 = vmatprep.subr.mxu0 0.0
        %1943 = vmatpush1.msra.mxu0 %v846
        %1944 = vmatprep.subr.mxu0 0.0
        %1945 = vmatpush1.msra.mxu0 0.0
        %1946 = vmatprep.subr.mxu0 0.0
        %1947 = vmatpush1.msra.mxu0 0.0
        %1948 = vmatprep.subr.mxu0 0.0
        %1949 = vmatpush1.msra.mxu0 0.0
        %1950 = vmatprep.subr.mxu0 0.0
        %1951 = vmatpush1.msra.mxu0 0.0
        %1952 = vmatprep.subr.mxu0 0.0
        %1953 = vmatpush1.msra.mxu0 0.0
        %1954 = vmatprep.subr.mxu0 0.0
        %1955 = vmatpush1.msra.mxu0 0.0
        %1956 = vmatprep.subr.mxu0 0.0
        %1957 = vmatpush1.msra.mxu0 0.0
        %1958 = vmatprep.subr.mxu0 0.0
        %1959 = vmatpush1.msra.mxu0 0.0
        %1960 = vmatprep.subr.mxu0 0.0
        %1961 = vmatpush1.msra.mxu0 0.0
        %1962 = vmatprep.subr.mxu0 0.0
        %1963 = vmatpush1.msra.mxu0 0.0
        %1964 = vmatprep.subr.mxu0 0.0
        %1965 = vmatpush1.msra.mxu0 0.0
        %1966 = vmatprep.subr.mxu0 0.0
        %1967 = vmatpush1.msra.mxu0 0.0
        %1968 = vmatprep.subr.mxu0 0.0
        %1969 = vmatpush1.msra.mxu0 0.0
        %1970 = vmatprep.subr.mxu0 0.0
        %1971 = vmatpush1.msra.mxu0 0.0
        %1972 = vmatprep.subr.mxu0 0.0
        %1973 = vmatpush1.msra.mxu0 0.0
        %1974 = vmatprep.subr.mxu0 0.0
        %1975 = vmatpush1.msra.mxu0 0.0
        %1976 = vmatprep.subr.mxu0 0.0
        %1977 = vmatpush1.msra.mxu0 0.0
        %1978 = vmatprep.subr.mxu0 0.0
        %1979 = vmatpush1.msra.mxu0 0.0
        %1980 = vmatprep.subr.mxu0 0.0
        %1981 = vmatpush1.msra.mxu0 0.0
        %1982 = vmatprep.subr.mxu0 0.0
        %1983 = vmatpush1.msra.mxu0 0.0
        %1984 = vmatprep.subr.mxu0 0.0
        %1985 = vmatpush1.msra.mxu0 0.0
        %1986 = vmatprep.subr.mxu0 0.0
        %1987 = vmatpush1.msra.mxu0 0.0
        %1988 = vmatprep.subr.mxu0 0.0
        %1989 = vmatpush1.msra.mxu0 0.0
        %1990 = vmatprep.subr.mxu0 0.0
        %1991 = vmatpush1.msra.mxu0 0.0
        %1992 = vmatprep.subr.mxu0 0.0
        %1993 = vmatpush1.msra.mxu0 0.0
        %1994 = vmatprep.subr.mxu0 0.0
        %1995 = vmatpush1.msra.mxu0 0.0
        %1996 = vmatprep.subr.mxu0 0.0
        %1997 = vmatpush1.msra.mxu0 0.0
        %1998 = vmatprep.subr.mxu0 0.0
        %1999 = vmatpush1.msra.mxu0 0.0
        %2000 = vmatprep.subr.mxu0 0.0
        %2001 = vmatpush1.msra.mxu0 0.0
        %2002 = vmatprep.subr.mxu0 0.0
        %2003 = vmatpush1.msra.mxu0 0.0
        %2004 = vmatprep.mubr.f32.mxu0 0.0
        %2005 = vmatmul.mubr.f32.gmra.mrb[0].mxu0 %v1938
        %v2006 = vpop.f32.mrb[0].mxu0
        %v2007 = vadd.f32 0.0, %v2006
        %v2008 = vpop.f32.mrb[0].mxu0
        %2009 = vdwg.mxu0
        %v2011 = vsel %vm851, %v1570, 0
        %2013 = vmatprep.subr.mxu0 0.0
        %2014 = vmatpush1.msra.mxu0 %v847
        %2015 = vmatprep.subr.mxu0 0.0
        %2016 = vmatpush1.msra.mxu0 %v848
        %2017 = vmatprep.subr.mxu0 0.0
        %2018 = vmatpush1.msra.mxu0 0.0
        %2019 = vmatprep.subr.mxu0 0.0
        %2020 = vmatpush1.msra.mxu0 0.0
        %2021 = vmatprep.subr.mxu0 0.0
        %2022 = vmatpush1.msra.mxu0 0.0
        %2023 = vmatprep.subr.mxu0 0.0
        %2024 = vmatpush1.msra.mxu0 0.0
        %2025 = vmatprep.subr.mxu0 0.0
        %2026 = vmatpush1.msra.mxu0 0.0
        %2027 = vmatprep.subr.mxu0 0.0
        %2028 = vmatpush1.msra.mxu0 0.0
        %2029 = vmatprep.subr.mxu0 0.0
        %2030 = vmatpush1.msra.mxu0 0.0
        %2031 = vmatprep.subr.mxu0 0.0
        %2032 = vmatpush1.msra.mxu0 0.0
        %2033 = vmatprep.subr.mxu0 0.0
        %2034 = vmatpush1.msra.mxu0 0.0
        %2035 = vmatprep.subr.mxu0 0.0
        %2036 = vmatpush1.msra.mxu0 0.0
        %2037 = vmatprep.subr.mxu0 0.0
        %2038 = vmatpush1.msra.mxu0 0.0
        %2039 = vmatprep.subr.mxu0 0.0
        %2040 = vmatpush1.msra.mxu0 0.0
        %2041 = vmatprep.subr.mxu0 0.0
        %2042 = vmatpush1.msra.mxu0 0.0
        %2043 = vmatprep.subr.mxu0 0.0
        %2044 = vmatpush1.msra.mxu0 0.0
        %2045 = vmatprep.subr.mxu0 0.0
        %2046 = vmatpush1.msra.mxu0 0.0
        %2047 = vmatprep.subr.mxu0 0.0
        %2048 = vmatpush1.msra.mxu0 0.0
        %2049 = vmatprep.subr.mxu0 0.0
        %2050 = vmatpush1.msra.mxu0 0.0
        %2051 = vmatprep.subr.mxu0 0.0
        %2052 = vmatpush1.msra.mxu0 0.0
        %2053 = vmatprep.subr.mxu0 0.0
        %2054 = vmatpush1.msra.mxu0 0.0
        %2055 = vmatprep.subr.mxu0 0.0
        %2056 = vmatpush1.msra.mxu0 0.0
        %2057 = vmatprep.subr.mxu0 0.0
        %2058 = vmatpush1.msra.mxu0 0.0
        %2059 = vmatprep.subr.mxu0 0.0
        %2060 = vmatpush1.msra.mxu0 0.0
        %2061 = vmatprep.subr.mxu0 0.0
        %2062 = vmatpush1.msra.mxu0 0.0
        %2063 = vmatprep.subr.mxu0 0.0
        %2064 = vmatpush1.msra.mxu0 0.0
        %2065 = vmatprep.subr.mxu0 0.0
        %2066 = vmatpush1.msra.mxu0 0.0
        %2067 = vmatprep.subr.mxu0 0.0
        %2068 = vmatpush1.msra.mxu0 0.0
        %2069 = vmatprep.subr.mxu0 0.0
        %2070 = vmatpush1.msra.mxu0 0.0
        %2071 = vmatprep.subr.mxu0 0.0
        %2072 = vmatpush1.msra.mxu0 0.0
        %2073 = vmatprep.subr.mxu0 0.0
        %2074 = vmatpush1.msra.mxu0 0.0
        %2075 = vmatprep.subr.mxu0 0.0
        %2076 = vmatpush1.msra.mxu0 0.0
        %2077 = vmatprep.mubr.f32.mxu0 0.0
        %2078 = vmatmul.mubr.f32.gmra.mrb[0].mxu0 %v2011
        %v2079 = vpop.f32.mrb[0].mxu0
        %v2080 = vadd.f32 0.0, %v2079
        %v2081 = vpop.f32.mrb[0].mxu0
        %2082 = vdwg.mxu0
        %v2084 = vsel %vm851, %v1571, 0
        %2086 = vmatprep.subr.mxu0 0.0
        %2087 = vmatpush1.msra.mxu0 %v849
        %2088 = vmatprep.subr.mxu0 0.0
        %2089 = vmatpush1.msra.mxu0 %v850
        %2090 = vmatprep.subr.mxu0 0.0
        %2091 = vmatpush1.msra.mxu0 0.0
        %2092 = vmatprep.subr.mxu0 0.0
        %2093 = vmatpush1.msra.mxu0 0.0
        %2094 = vmatprep.subr.mxu0 0.0
        %2095 = vmatpush1.msra.mxu0 0.0
        %2096 = vmatprep.subr.mxu0 0.0
        %2097 = vmatpush1.msra.mxu0 0.0
        %2098 = vmatprep.subr.mxu0 0.0
        %2099 = vmatpush1.msra.mxu0 0.0
        %2100 = vmatprep.subr.mxu0 0.0
        %2101 = vmatpush1.msra.mxu0 0.0
        %2102 = vmatprep.subr.mxu0 0.0
        %2103 = vmatpush1.msra.mxu0 0.0
        %2104 = vmatprep.subr.mxu0 0.0
        %2105 = vmatpush1.msra.mxu0 0.0
        %2106 = vmatprep.subr.mxu0 0.0
        %2107 = vmatpush1.msra.mxu0 0.0
        %2108 = vmatprep.subr.mxu0 0.0
        %2109 = vmatpush1.msra.mxu0 0.0
        %2110 = vmatprep.subr.mxu0 0.0
        %2111 = vmatpush1.msra.mxu0 0.0
        %2112 = vmatprep.subr.mxu0 0.0
        %2113 = vmatpush1.msra.mxu0 0.0
        %2114 = vmatprep.subr.mxu0 0.0
        %2115 = vmatpush1.msra.mxu0 0.0
        %2116 = vmatprep.subr.mxu0 0.0
        %2117 = vmatpush1.msra.mxu0 0.0
        %2118 = vmatprep.subr.mxu0 0.0
        %2119 = vmatpush1.msra.mxu0 0.0
        %2120 = vmatprep.subr.mxu0 0.0
        %2121 = vmatpush1.msra.mxu0 0.0
        %2122 = vmatprep.subr.mxu0 0.0
        %2123 = vmatpush1.msra.mxu0 0.0
        %2124 = vmatprep.subr.mxu0 0.0
        %2125 = vmatpush1.msra.mxu0 0.0
        %2126 = vmatprep.subr.mxu0 0.0
        %2127 = vmatpush1.msra.mxu0 0.0
        %2128 = vmatprep.subr.mxu0 0.0
        %2129 = vmatpush1.msra.mxu0 0.0
        %2130 = vmatprep.subr.mxu0 0.0
        %2131 = vmatpush1.msra.mxu0 0.0
        %2132 = vmatprep.subr.mxu0 0.0
        %2133 = vmatpush1.msra.mxu0 0.0
        %2134 = vmatprep.subr.mxu0 0.0
        %2135 = vmatpush1.msra.mxu0 0.0
        %2136 = vmatprep.subr.mxu0 0.0
        %2137 = vmatpush1.msra.mxu0 0.0
        %2138 = vmatprep.subr.mxu0 0.0
        %2139 = vmatpush1.msra.mxu0 0.0
        %2140 = vmatprep.subr.mxu0 0.0
        %2141 = vmatpush1.msra.mxu0 0.0
        %2142 = vmatprep.subr.mxu0 0.0
        %2143 = vmatpush1.msra.mxu0 0.0
        %2144 = vmatprep.subr.mxu0 0.0
        %2145 = vmatpush1.msra.mxu0 0.0
        %2146 = vmatprep.subr.mxu0 0.0
        %2147 = vmatpush1.msra.mxu0 0.0
        %2148 = vmatprep.subr.mxu0 0.0
        %2149 = vmatpush1.msra.mxu0 0.0
        %2150 = vmatprep.mubr.f32.mxu0 0.0
        %2151 = vmatmul.mubr.f32.gmra.mrb[0].mxu0 %v2084
        %v2152 = vpop.f32.mrb[0].mxu0
        %v2153 = vadd.f32 0.0, %v2152
        %v2154 = vpop.f32.mrb[0].mxu0
        %2155 = vdwg.mxu0
        %2156 = vst.msk [vmem:[#allocation6] sm:$0xff] %vm851, %v1642
        %2158 = vrot.lane.b32.xlu0 %v1715, 16
        %v2159 = vpop.permute.xlu0 %2158
        %vm2161 = vcmask 261248
        %2162 = vst.msk [vmem:[#allocation6] sm:$0xff] %vm2161, %v2159
        %2164 = vrot.lane.b32.xlu0 %v1788, 32
        %v2165 = vpop.permute.xlu0 %2164
        %vm2167 = vcmask 392448
        %2168 = vst.msk [vmem:[#allocation6] sm:$0xff] %vm2167, %v2165
        %2170 = vrot.lane.b32.xlu0 %v1861, 48
        %v2171 = vpop.permute.xlu0 %2170
        %vm2173 = vcmask 523648
        %2174 = vst.msk [vmem:[#allocation6] sm:$0xff] %vm2173, %v2171
        %2176 = vrot.lane.b32.xlu0 %v1934, 64
        %v2177 = vpop.permute.xlu0 %2176
        %vm2179 = vcmask 654848
        %2180 = vst.msk [vmem:[#allocation6] sm:$0xff] %vm2179, %v2177
        %2182 = vrot.lane.b32.xlu0 %v2007, 80
        %v2183 = vpop.permute.xlu0 %2182
        %vm2185 = vcmask 786048
        %2186 = vst.msk [vmem:[#allocation6] sm:$0xff] %vm2185, %v2183
        %2188 = vrot.lane.b32.xlu0 %v2080, 96
        %v2189 = vpop.permute.xlu0 %2188
        %vm2191 = vcmask 917248
        %2192 = vst.msk [vmem:[#allocation6] sm:$0xff] %vm2191, %v2189
        %2194 = vrot.lane.b32.xlu0 %v2153, 112
        %v2195 = vpop.permute.xlu0 %2194
        %vm2197 = vcmask 1048448
        %2198 = vst.msk [vmem:[#allocation6] sm:$0xff] %vm2197, %v2195
        %v2199 = vld [vmem:[#allocation6] sm:$0xff]
        %v2200 = vld [vmem:[#allocation12] sm:$0xff]
        %v2201 = vld [vmem:[#allocation12 + $0x8] sm:$0xff]
        %v2202 = vld [vmem:[#allocation12 + $0x10] sm:$0xff]
        %v2203 = vld [vmem:[#allocation12 + $0x18] sm:$0xff]
        %v2204 = vld [vmem:[#allocation12 + $0x20] sm:$0xff]
        %v2205 = vld [vmem:[#allocation12 + $0x28] sm:$0xff]
        %v2206 = vld [vmem:[#allocation12 + $0x30] sm:$0xff]
        %v2207 = vld [vmem:[#allocation12 + $0x38] sm:$0xff]
        %v2208 = vld [vmem:[#allocation12 + $0x40] sm:$0xff]
        %v2209 = vld [vmem:[#allocation12 + $0x48] sm:$0xff]
        %v2210 = vld [vmem:[#allocation12 + $0x50] sm:$0xff]
        %v2211 = vld [vmem:[#allocation12 + $0x58] sm:$0xff]
        %v2212 = vld [vmem:[#allocation12 + $0x60] sm:$0xff]
        %v2213 = vld [vmem:[#allocation12 + $0x68] sm:$0xff]
        %v2214 = vld [vmem:[#allocation12 + $0x70] sm:$0xff]
        %v2215 = vld [vmem:[#allocation12 + $0x78] sm:$0xff]
        %v2216 = vld [vmem:[%s4] sm:$0x1]
        %v2218 = vlaneseq
        %v2219 = vshrl.u32 %v2218, 7
        %v2220 = vsub.s32 0, %v2219
        %v2221 = vrot.slane %v2216, %v2220
        %2223 = vmatprep.subr.mxu0 0.0
        %2224 = vmatpush1.msra.mxu0 %v2200
        %2225 = vmatprep.subr.mxu0 0.0
        %2226 = vmatpush1.msra.mxu0 %v2201
        %2227 = vmatprep.subr.mxu0 0.0
        %2228 = vmatpush1.msra.mxu0 %v2202
        %2229 = vmatprep.subr.mxu0 0.0
        %2230 = vmatpush1.msra.mxu0 %v2203
        %2231 = vmatprep.subr.mxu0 0.0
        %2232 = vmatpush1.msra.mxu0 %v2204
        %2233 = vmatprep.subr.mxu0 0.0
        %2234 = vmatpush1.msra.mxu0 %v2205
        %2235 = vmatprep.subr.mxu0 0.0
        %2236 = vmatpush1.msra.mxu0 %v2206
        %2237 = vmatprep.subr.mxu0 0.0
        %2238 = vmatpush1.msra.mxu0 %v2207
        %2239 = vmatprep.subr.mxu0 0.0
        %2240 = vmatpush1.msra.mxu0 %v2208
        %2241 = vmatprep.subr.mxu0 0.0
        %2242 = vmatpush1.msra.mxu0 %v2209
        %2243 = vmatprep.subr.mxu0 0.0
        %2244 = vmatpush1.msra.mxu0 %v2210
        %2245 = vmatprep.subr.mxu0 0.0
        %2246 = vmatpush1.msra.mxu0 %v2211
        %2247 = vmatprep.subr.mxu0 0.0
        %2248 = vmatpush1.msra.mxu0 %v2212
        %2249 = vmatprep.subr.mxu0 0.0
        %2250 = vmatpush1.msra.mxu0 %v2213
        %2251 = vmatprep.subr.mxu0 0.0
        %2252 = vmatpush1.msra.mxu0 %v2214
        %2253 = vmatprep.subr.mxu0 0.0
        %2254 = vmatpush1.msra.mxu0 %v2215
        %2255 = vmatprep.subr.mxu0 0.0
        %2256 = vmatpush1.msra.mxu0 0.0
        %2257 = vmatprep.subr.mxu0 0.0
        %2258 = vmatpush1.msra.mxu0 0.0
        %2259 = vmatprep.subr.mxu0 0.0
        %2260 = vmatpush1.msra.mxu0 0.0
        %2261 = vmatprep.subr.mxu0 0.0
        %2262 = vmatpush1.msra.mxu0 0.0
        %2263 = vmatprep.subr.mxu0 0.0
        %2264 = vmatpush1.msra.mxu0 0.0
        %2265 = vmatprep.subr.mxu0 0.0
        %2266 = vmatpush1.msra.mxu0 0.0
        %2267 = vmatprep.subr.mxu0 0.0
        %2268 = vmatpush1.msra.mxu0 0.0
        %2269 = vmatprep.subr.mxu0 0.0
        %2270 = vmatpush1.msra.mxu0 0.0
        %2271 = vmatprep.subr.mxu0 0.0
        %2272 = vmatpush1.msra.mxu0 0.0
        %2273 = vmatprep.subr.mxu0 0.0
        %2274 = vmatpush1.msra.mxu0 0.0
        %2275 = vmatprep.subr.mxu0 0.0
        %2276 = vmatpush1.msra.mxu0 0.0
        %2277 = vmatprep.subr.mxu0 0.0
        %2278 = vmatpush1.msra.mxu0 0.0
        %2279 = vmatprep.subr.mxu0 0.0
        %2280 = vmatpush1.msra.mxu0 0.0
        %2281 = vmatprep.subr.mxu0 0.0
        %2282 = vmatpush1.msra.mxu0 0.0
        %2283 = vmatprep.subr.mxu0 0.0
        %2284 = vmatpush1.msra.mxu0 0.0
        %2285 = vmatprep.subr.mxu0 0.0
        %2286 = vmatpush1.msra.mxu0 0.0
        %2287 = vmatprep.mubr.f32.mxu0 0.0
        %2288 = vmatmul.mubr.f32.gmra.mrb[0].mxu0 %v2199
        %v2289 = vpop.f32.mrb[0].mxu0
        %v2290 = vadd.f32 %v2221, %v2289
        %v2291 = vpop.f32.mrb[0].mxu0
        %2292 = vdwg.mxu0
        %2293 = vst [vmem:[%s285] sm:$0xff] %v2290
        %s2294 = sand.u32 %s155, 1
        %s2295 = scalar_lea.sflag [#allocation9], %s2294
        %s2296 = sand.u32 %s155, 1
        %s2297 = smul.addr %s2296, 8
        %s2298 = scalar_lea.vmem [#allocation13], %s2297
        // Predicated region
        $region57: #{tpu_custom_call.1} parent=39 // pred_check
          %p2299 = pneg %p165
        $region58: #{tpu_custom_call.1} parent=39 // pred_check_branch
          %2301 = sbr.rel (%p2299) target = $region60
        $region59: #{tpu_custom_call.1} parent=39 // pred_region
          %s2303 = ssub.s32 128, 128
          %2304 = vsyncadd %s2295, %s2303
          %s2305 = smul.addr %s27, 2
          %s2306 = sadd.s32 %s28, %s2305
          %s2307 = smul.addr %s2306, 128
          %s2308 = scalar_lea.hbm %s5, %s2307
          %s2310 = sshll.u32 %s2298, 4
          %s2311 = int_to_ptr.vmem [resolvable:$true] %s2310
          %2313 = dma.vmem_to_hbm [thread:$0]  %s2311, 128, %s2308, %s2295
        $region60: #{tpu_custom_call.1} parent=39 // pred_fallthru
          _
      $region40: #{tpu_custom_call.1} parent=5 // pred_fallthru
        _
      %p2314 = scmp.le.s32.totalorder 2, %s18
      // Predicated region
      $region61: #{tpu_custom_call.1} parent=5 // pred_check
        %p2315 = pneg %p2314
      $region62: #{tpu_custom_call.1} parent=5 // pred_check_branch
        %2317 = sbr.rel (%p2315) target = $region64
      $region63: #{tpu_custom_call.1} parent=5 // pred_region
        %s2318 = ssub.s32 %s18, 2
        // Predicated region
        $region65: #{tpu_custom_call.1} parent=63 // pred_check
          %p2319 = pneg %p171
        $region66: #{tpu_custom_call.1} parent=63 // pred_check_branch
          %2321 = sbr.rel (%p2319) target = $region68
        $region67: #{tpu_custom_call.1} parent=63 // pred_region
          %s2322 = sand.u32 %s156, 1
          %s2323 = scalar_lea.sflag [#allocation9], %s2322
          %s2324 = sand.u32 %s156, 1
          %s2325 = smul.addr %s2324, 8
          %s2326 = scalar_lea.vmem [#allocation13], %s2325
          %2327 = dma.done %s2323, 128
        $region68: #{tpu_custom_call.1} parent=63 // pred_fallthru
          _
      $region64: #{tpu_custom_call.1} parent=5 // pred_fallthru
        _
    $region6: #{tpu_custom_call.1} parent=1 // loop_footer
      %s22 = sadd.s32 1, %s18
    $region7: #{tpu_custom_call.1} parent=1 // loop_footer_branch
      %17 = sbr.rel target = $region3
    $region8: #{tpu_custom_call.1} parent=1 // loop_exit
      _
    %2328 = vsyncpa [#allocation8], 1
    %s2329 = scalar_lea.sflag [#allocation8], 1
    %2330 = vsyncpa %s2329, 1
    %2331 = vsyncpa [#allocation11], 1
    %2332 = vsyncpa [#allocation9], 1
    %s2333 = scalar_lea.sflag [#allocation9], 1
    %2334 = vsyncpa %s2333, 1

</llo_original>
